<compile_context>
chip_gen: v7x
topology: tpu7x:2x2x1
jax: 0.10.0
libtpu: 0.0.40
codegen_flags: <defaults>
</compile_context>

<pallas_src>
import functools
import math

import jax
import jax.numpy as jnp
from jax.experimental import pallas as pl
from jax.experimental.pallas import tpu as pltpu


# ----------------------------------------------------------------------------
# Pallas kernel: fused temporal conv (kt accumulated dots) + GLU gate.
# Residual branch is pre-folded into the weights by the wrapper.
# ----------------------------------------------------------------------------
def _fused_temporal_glu_kernel(x_ref, w_ref, b_ref, o_ref, *, kt, T, Np, c_out, Bt):
    """
    x_ref : (Bt, c_in, (T+2)*Np)  time-padded (1,1) and node-padded input
    w_ref : (kt, 2*c_out, c_in)   per-tap conv1 weights (+ folded residual)
    b_ref : (2*c_out, 1)          f32 bias (+ folded residual bias)
    o_ref : (Bt, c_out, T*Np)     output
    """
    cols = T * Np
    bias = b_ref[...]                                      # (2*c_out, 1) f32
    for bi in range(Bt):
        x = x_ref[bi]                                      # (c_in, (T+2)*Np)
        # out[:, t*Np+n] = bias + sum_k w_k @ x_pad[:, (t+k)*Np+n]
        # -> tap k contributes a full-width dot on a 128-aligned column window.
        acc = jnp.dot(w_ref[0], x[:, 0:cols],
                      preferred_element_type=jnp.float32)
        for k in range(1, kt):
            acc = acc + jnp.dot(w_ref[k], x[:, k * Np:k * Np + cols],
                                preferred_element_type=jnp.float32)
        acc = acc + bias
        p = acc[:c_out, :]                                 # residual already folded in
        q = acc[c_out:, :]
        o_ref[bi] = (p * jax.nn.sigmoid(q)).astype(o_ref.dtype)   # f32 gate epilogue


# ----------------------------------------------------------------------------
# Parameter folding (residual branch -> conv1 weights) + per-tap stacking
# ----------------------------------------------------------------------------
def _fold_params(params, c_in, c_out, kt, compute_dtype):
    w1, b1, wr, br = params
    w_eff = jnp.asarray(w1, jnp.float32)[..., 0]           # (2*c_out, c_in, kt)
    b_eff = jnp.asarray(b1, jnp.float32)                   # (2*c_out,)

    if c_in > c_out:
        # residual = conv_reshape(x): identical kernel geometry -> fold into P rows.
        w_eff = w_eff.at[:c_out].add(jnp.asarray(wr, jnp.float32)[..., 0])
        b_eff = b_eff.at[:c_out].add(jnp.asarray(br, jnp.float32))
    else:
        if c_in < c_out:
            n_pad = round((c_out - c_in) / 2)              # mirrors the PyTorch module
            pad_after = n_pad - 1 if c_in % 2 != 0 else n_pad
            if c_in + n_pad + pad_after != c_out:
                raise ValueError("module's channel padding does not produce c_out channels")
        else:
            n_pad = 0
        # residual = (channel-padded) x: identity at the centre tap (k=1 with time pad 1).
        rows_i = jnp.arange(c_in) + n_pad
        cols_i = jnp.arange(c_in)
        w_eff = w_eff.at[rows_i, cols_i, 1].add(1.0)

    # (rows, c_in, kt) -> (kt, rows, c_in): one (rows, c_in) weight tile per tap.
    w_taps = jnp.transpose(w_eff, (2, 0, 1)).astype(compute_dtype)
    return w_taps, b_eff.reshape(2 * c_out, 1)


# ----------------------------------------------------------------------------
# Module-level forward (mirrors TemporalConvLayer.forward)
# ----------------------------------------------------------------------------
def temporal_conv_layer(x, params, c_in, c_out, kt=3, compute_dtype=None):
    """x: (B, c_in, T, N) -> (B, c_out, T, N). compute_dtype=jnp.bfloat16 for bf16 MXU operands."""
    if kt != 3:
        raise NotImplementedError("fused kernel assumes kt == 3 (module hard-codes padding=(1, 0))")
    B, cx, T, N = x.shape
    assert cx == c_in and T >= 1

    out_dtype = jnp.dtype(x.dtype)
    cdt = jnp.dtype(compute_dtype) if compute_dtype is not None else out_dtype

    w_taps, bias_col = _fold_params(params, c_in, c_out, kt, cdt)
    rows = 2 * c_out

    # Lane-align the node axis; fold the temporal (1,1) zero-padding and the
    # optional compute-dtype cast into the same single pad pass over x.
    Np = ((N + 127) // 128) * 128
    Tp = T + 2
    x_pad = jnp.pad(x.astype(cdt), ((0, 0), (0, 0), (1, 1), (0, Np - N)))
    x_flat = x_pad.reshape(B, c_in, Tp * Np)               # contiguous reshape (free)

    # Batch blocking: largest Bt dividing B that keeps double-buffered blocks
    # inside a v7x-safe VMEM budget.
    per_b_bytes = (c_in * Tp * Np * cdt.itemsize + c_out * T * Np * out_dtype.itemsize)
    budget = 40 << 20
    Bt = 1
    for cand in (8, 4, 2, 1):
        if B % cand == 0 and 2 * cand * per_b_bytes <= budget:
            Bt = cand
            break

    acc_bytes = 2 * rows * T * Np * 4                       # f32 accumulator working set
    w_bytes = kt * rows * c_in * cdt.itemsize + rows * 4
    vmem_needed = 2 * Bt * per_b_bytes + acc_bytes + w_bytes
    vmem_limit = int(min(max(vmem_needed * 5 // 4, 32 << 20), 100 << 20))

    kernel = functools.partial(_fused_temporal_glu_kernel,
                               kt=kt, T=T, Np=Np, c_out=c_out, Bt=Bt)
    out_flat = pl.pallas_call(
        kernel,
        out_shape=jax.ShapeDtypeStruct((B, c_out, T * Np), out_dtype),
        grid=(B // Bt,),
        in_specs=[
            pl.BlockSpec((Bt, c_in, Tp * Np), lambda b: (b, 0, 0)),
            pl.BlockSpec((kt, rows, c_in), lambda b: (0, 0, 0)),   # VMEM-resident weights
            pl.BlockSpec((rows, 1), lambda b: (0, 0)),             # VMEM-resident bias
        ],
        out_specs=pl.BlockSpec((Bt, c_out, T * Np), lambda b: (b, 0, 0)),
        compiler_params=pltpu.CompilerParams(
            dimension_semantics=("parallel",),
            vmem_limit_bytes=vmem_limit),
    )(x_flat, w_taps, bias_col)

    out = out_flat.reshape(B, c_out, T, Np)
    if Np != N:
        out = out[..., :N]                                  # drop padded node columns
    return out


# ----------------------------------------------------------------------------
# Pure-JAX reference (module-faithful, f32 HIGHEST precision) for verification
# ----------------------------------------------------------------------------
def _conv_ref(x, w, b):
    y = jax.lax.conv_general_dilated(
        x, w, window_strides=(1, 1), padding=((1, 1), (0, 0)),
        dimension_numbers=("NCHW", "OIHW", "NCHW"),
        precision=jax.lax.Precision.HIGHEST)
    return y + b[None, :, None, None]


def _ref_forward(x, params, c_in, c_out, kt=3):
    w1, b1, wr, br = params
    x_res = x
    if c_in < c_out:
        n_pad = round((c_out - c_in) / 2)
        pad_after = n_pad - 1 if c_in % 2 != 0 else n_pad
        x_res = jnp.pad(x, ((0, 0), (n_pad, pad_after), (0, 0), (0, 0)))
    elif c_in > c_out:
        x_res = _conv_ref(x, wr, br)
    x_conv = _conv_ref(x, w1, b1)
    t_res = x_res.shape[2]
    p = x_conv[:, :c_out, :t_res, :]
    q = x_conv[:, -c_out:, :t_res, :]
    return (p + x_res) * jax.nn.sigmoid(q)


# ----------------------------------------------------------------------------
if __name__ == "__main__":
    def _run_case(key, B, c_in, c_out, T, N, kt=3, compute_dtype=None, atol=5e-2, rtol=2e-2):
        kx, k1, k2, k3, k4 = jax.random.split(key, 5)
        bound = 1.0 / math.sqrt(c_in * kt)
        w1 = jax.random.uniform(k1, (2 * c_out, c_in, kt, 1), jnp.float32, -bound, bound)
        b1 = jax.random.uniform(k2, (2 * c_out,), jnp.float32, -bound, bound)
        wr = jax.random.uniform(k3, (c_out, c_in, kt, 1), jnp.float32, -bound, bound)
        br = jax.random.uniform(k4, (c_out,), jnp.float32, -bound, bound)
        params = (w1, b1, wr, br)
        x = jax.random.normal(kx, (B, c_in, T, N), jnp.float32)

        out = jax.block_until_ready(
            temporal_conv_layer(x, params, c_in, c_out, kt, compute_dtype=compute_dtype))
        ref = jax.block_until_ready(_ref_forward(x, params, c_in, c_out, kt))
        assert out.shape == ref.shape == (B, c_out, T, N), (out.shape, ref.shape)
        err = float(jnp.max(jnp.abs(out.astype(jnp.float32) - ref)))
        assert jnp.allclose(out.astype(jnp.float32), ref, atol=atol, rtol=rtol), \
            (c_in, c_out, compute_dtype, err)
        return err

    root = jax.random.PRNGKey(0)
    k_a, k_b, k_c, k_d = jax.random.split(root, 4)

    # Exercise all three residual branches of the module (node axis gets padded 16 -> 128).
    _run_case(k_a, B=2, c_in=4, c_out=8, T=8, N=16)   # c_in < c_out : channel-pad residual
    _run_case(k_b, B=2, c_in=8, c_out=8, T=8, N=16)   # c_in == c_out: identity residual
    _run_case(k_c, B=2, c_in=8, c_out=4, T=8, N=16)   # c_in > c_out : conv_reshape residual (fused)

    # Lane-aligned node axis (no node padding) + Bt=4 batch blocking.
    _run_case(k_d, B=4, c_in=4, c_out=8, T=6, N=128)

    # bf16 MXU operands (v5e/v6e/v7x recipe): f32 accumulate + f32 gate epilogue.
    _run_case(k_a, B=2, c_in=4, c_out=8, T=8, N=16,
              compute_dtype=jnp.bfloat16, atol=0.25, rtol=0.1)

    print("KERNEL_OK")
</pallas_src>

<mosaic_0001>
module attributes {stable_mosaic.version = 11 : i64} {
  func.func @_fused_temporal_glu_kernel(%arg0: i32, %arg1: memref<2x4x1280xf32, #tpu.memory_space<vmem>>, %arg2: memref<3x16x4xf32, #tpu.memory_space<vmem>>, %arg3: memref<16x1xf32, #tpu.memory_space<vmem>>, %arg4: memref<2x8x1024xf32, #tpu.memory_space<vmem>>) attributes {dimension_semantics = [#tpu.dimension_semantics<parallel>], iteration_bounds = array<i64: 1>, scalar_prefetch = 0 : i64, scratch_operands = 0 : i64, tpu.core_type = #tpu.core_type<tc>, window_params = [{transform_indices = @transform_0, window_bounds = array<i64: 2, 4, 1280>}, {pipeline_mode = #tpu.pipeline_mode<synchronous>, transform_indices = @transform_1, window_bounds = array<i64: 3, 16, 4>}, {pipeline_mode = #tpu.pipeline_mode<synchronous>, transform_indices = @transform_2, window_bounds = array<i64: 16, 1>}, {transform_indices = @transform_3, window_bounds = array<i64: 2, 8, 1024>}]} {
    %c0 = arith.constant 0 : index
    %c0_0 = arith.constant 0 : index
    %0 = vector.load %arg3[%c0, %c0_0] : memref<16x1xf32, #tpu.memory_space<vmem>>, vector<16x1xf32>
    %c0_1 = arith.constant 0 : index
    %c0_2 = arith.constant 0 : index
    %c0_3 = arith.constant 0 : index
    %1 = vector.load %arg1[%c0_1, %c0_2, %c0_3] : memref<2x4x1280xf32, #tpu.memory_space<vmem>>, vector<1x4x1280xf32>
    %2 = vector.shape_cast %1 : vector<1x4x1280xf32> to vector<4x1280xf32>
    %c0_4 = arith.constant 0 : index
    %c0_5 = arith.constant 0 : index
    %c0_6 = arith.constant 0 : index
    %3 = vector.load %arg2[%c0_4, %c0_5, %c0_6] : memref<3x16x4xf32, #tpu.memory_space<vmem>>, vector<1x16x4xf32>
    %4 = vector.shape_cast %3 : vector<1x16x4xf32> to vector<16x4xf32>
    %5 = vector.extract_strided_slice %2 {offsets = [0, 0], sizes = [4, 1024], strides = [1, 1]} : vector<4x1280xf32> to vector<4x1024xf32>
    %cst = arith.constant dense<0.000000e+00> : vector<16x1024xf32>
    %6 = tpu.matmul %4, %5, %cst {dimension_numbers = #tpu.dot_dimension_numbers<[1], [0], [0], [1], [0, 0, 1, 1], [], []>} : vector<16x4xf32>, vector<4x1024xf32>, vector<16x1024xf32> -> vector<16x1024xf32>
    %c1 = arith.constant 1 : index
    %c0_7 = arith.constant 0 : index
    %c0_8 = arith.constant 0 : index
    %7 = vector.load %arg2[%c1, %c0_7, %c0_8] : memref<3x16x4xf32, #tpu.memory_space<vmem>>, vector<1x16x4xf32>
    %8 = vector.shape_cast %7 : vector<1x16x4xf32> to vector<16x4xf32>
    %9 = vector.extract_strided_slice %2 {offsets = [0, 128], sizes = [4, 1024], strides = [1, 1]} : vector<4x1280xf32> to vector<4x1024xf32>
    %cst_9 = arith.constant dense<0.000000e+00> : vector<16x1024xf32>
    %10 = tpu.matmul %8, %9, %cst_9 {dimension_numbers = #tpu.dot_dimension_numbers<[1], [0], [0], [1], [0, 0, 1, 1], [], []>} : vector<16x4xf32>, vector<4x1024xf32>, vector<16x1024xf32> -> vector<16x1024xf32>
    %11 = arith.addf %6, %10 : vector<16x1024xf32>
    %c2 = arith.constant 2 : index
    %c0_10 = arith.constant 0 : index
    %c0_11 = arith.constant 0 : index
    %12 = vector.load %arg2[%c2, %c0_10, %c0_11] : memref<3x16x4xf32, #tpu.memory_space<vmem>>, vector<1x16x4xf32>
    %13 = vector.shape_cast %12 : vector<1x16x4xf32> to vector<16x4xf32>
    %14 = vector.extract_strided_slice %2 {offsets = [0, 256], sizes = [4, 1024], strides = [1, 1]} : vector<4x1280xf32> to vector<4x1024xf32>
    %cst_12 = arith.constant dense<0.000000e+00> : vector<16x1024xf32>
    %15 = tpu.matmul %13, %14, %cst_12 {dimension_numbers = #tpu.dot_dimension_numbers<[1], [0], [0], [1], [0, 0, 1, 1], [], []>} : vector<16x4xf32>, vector<4x1024xf32>, vector<16x1024xf32> -> vector<16x1024xf32>
    %16 = arith.addf %11, %15 : vector<16x1024xf32>
    %17 = vector.broadcast %0 : vector<16x1xf32> to vector<16x1024xf32>
    %18 = arith.addf %16, %17 : vector<16x1024xf32>
    %19 = vector.extract_strided_slice %18 {offsets = [0, 0], sizes = [8, 1024], strides = [1, 1]} : vector<16x1024xf32> to vector<8x1024xf32>
    %20 = vector.extract_strided_slice %18 {offsets = [8, 0], sizes = [8, 1024], strides = [1, 1]} : vector<16x1024xf32> to vector<8x1024xf32>
    %21 = arith.negf %20 : vector<8x1024xf32>
    %22 = math.exp %21 : vector<8x1024xf32>
    %cst_13 = arith.constant 1.000000e+00 : f32
    %23 = vector.broadcast %cst_13 : f32 to vector<8x1024xf32>
    %24 = arith.addf %23, %22 : vector<8x1024xf32>
    %25 = arith.divf %23, %24 : vector<8x1024xf32>
    %26 = arith.mulf %19, %25 : vector<8x1024xf32>
    %c0_14 = arith.constant 0 : index
    %c0_15 = arith.constant 0 : index
    %c0_16 = arith.constant 0 : index
    %27 = vector.load %arg4[%c0_14, %c0_15, %c0_16] : memref<2x8x1024xf32, #tpu.memory_space<vmem>>, vector<1x8x1024xf32>
    %28 = vector.shape_cast %27 : vector<1x8x1024xf32> to vector<8x1024xf32>
    %29 = vector.shape_cast %26 : vector<8x1024xf32> to vector<1x8x1024xf32>
    tpu.vector_store %arg4[%c0_14, %c0_15, %c0_16], %29 {strides = array<i32>} : memref<2x8x1024xf32, #tpu.memory_space<vmem>>, vector<1x8x1024xf32>,
    %c1_17 = arith.constant 1 : index
    %c0_18 = arith.constant 0 : index
    %c0_19 = arith.constant 0 : index
    %30 = vector.load %arg1[%c1_17, %c0_18, %c0_19] : memref<2x4x1280xf32, #tpu.memory_space<vmem>>, vector<1x4x1280xf32>
    %31 = vector.shape_cast %30 : vector<1x4x1280xf32> to vector<4x1280xf32>
    %c0_20 = arith.constant 0 : index
    %c0_21 = arith.constant 0 : index
    %c0_22 = arith.constant 0 : index
    %32 = vector.load %arg2[%c0_20, %c0_21, %c0_22] : memref<3x16x4xf32, #tpu.memory_space<vmem>>, vector<1x16x4xf32>
    %33 = vector.shape_cast %32 : vector<1x16x4xf32> to vector<16x4xf32>
    %34 = vector.extract_strided_slice %31 {offsets = [0, 0], sizes = [4, 1024], strides = [1, 1]} : vector<4x1280xf32> to vector<4x1024xf32>
    %cst_23 = arith.constant dense<0.000000e+00> : vector<16x1024xf32>
    %35 = tpu.matmul %33, %34, %cst_23 {dimension_numbers = #tpu.dot_dimension_numbers<[1], [0], [0], [1], [0, 0, 1, 1], [], []>} : vector<16x4xf32>, vector<4x1024xf32>, vector<16x1024xf32> -> vector<16x1024xf32>
    %c1_24 = arith.constant 1 : index
    %c0_25 = arith.constant 0 : index
    %c0_26 = arith.constant 0 : index
    %36 = vector.load %arg2[%c1_24, %c0_25, %c0_26] : memref<3x16x4xf32, #tpu.memory_space<vmem>>, vector<1x16x4xf32>
    %37 = vector.shape_cast %36 : vector<1x16x4xf32> to vector<16x4xf32>
    %38 = vector.extract_strided_slice %31 {offsets = [0, 128], sizes = [4, 1024], strides = [1, 1]} : vector<4x1280xf32> to vector<4x1024xf32>
    %cst_27 = arith.constant dense<0.000000e+00> : vector<16x1024xf32>
    %39 = tpu.matmul %37, %38, %cst_27 {dimension_numbers = #tpu.dot_dimension_numbers<[1], [0], [0], [1], [0, 0, 1, 1], [], []>} : vector<16x4xf32>, vector<4x1024xf32>, vector<16x1024xf32> -> vector<16x1024xf32>
    %40 = arith.addf %35, %39 : vector<16x1024xf32>
    %c2_28 = arith.constant 2 : index
    %c0_29 = arith.constant 0 : index
    %c0_30 = arith.constant 0 : index
    %41 = vector.load %arg2[%c2_28, %c0_29, %c0_30] : memref<3x16x4xf32, #tpu.memory_space<vmem>>, vector<1x16x4xf32>
    %42 = vector.shape_cast %41 : vector<1x16x4xf32> to vector<16x4xf32>
    %43 = vector.extract_strided_slice %31 {offsets = [0, 256], sizes = [4, 1024], strides = [1, 1]} : vector<4x1280xf32> to vector<4x1024xf32>
    %cst_31 = arith.constant dense<0.000000e+00> : vector<16x1024xf32>
    %44 = tpu.matmul %42, %43, %cst_31 {dimension_numbers = #tpu.dot_dimension_numbers<[1], [0], [0], [1], [0, 0, 1, 1], [], []>} : vector<16x4xf32>, vector<4x1024xf32>, vector<16x1024xf32> -> vector<16x1024xf32>
    %45 = arith.addf %40, %44 : vector<16x1024xf32>
    %46 = vector.broadcast %0 : vector<16x1xf32> to vector<16x1024xf32>
    %47 = arith.addf %45, %46 : vector<16x1024xf32>
    %48 = vector.extract_strided_slice %47 {offsets = [0, 0], sizes = [8, 1024], strides = [1, 1]} : vector<16x1024xf32> to vector<8x1024xf32>
    %49 = vector.extract_strided_slice %47 {offsets = [8, 0], sizes = [8, 1024], strides = [1, 1]} : vector<16x1024xf32> to vector<8x1024xf32>
    %50 = arith.negf %49 : vector<8x1024xf32>
    %51 = math.exp %50 : vector<8x1024xf32>
    %cst_32 = arith.constant 1.000000e+00 : f32
    %52 = vector.broadcast %cst_32 : f32 to vector<8x1024xf32>
    %53 = arith.addf %52, %51 : vector<8x1024xf32>
    %54 = arith.divf %52, %53 : vector<8x1024xf32>
    %55 = arith.mulf %48, %54 : vector<8x1024xf32>
    %c1_33 = arith.constant 1 : index
    %c0_34 = arith.constant 0 : index
    %c0_35 = arith.constant 0 : index
    %56 = vector.load %arg4[%c1_33, %c0_34, %c0_35] : memref<2x8x1024xf32, #tpu.memory_space<vmem>>, vector<1x8x1024xf32>
    %57 = vector.shape_cast %56 : vector<1x8x1024xf32> to vector<8x1024xf32>
    %58 = vector.shape_cast %55 : vector<8x1024xf32> to vector<1x8x1024xf32>
    tpu.vector_store %arg4[%c1_33, %c0_34, %c0_35], %58 {strides = array<i32>} : memref<2x8x1024xf32, #tpu.memory_space<vmem>>, vector<1x8x1024xf32>,
    return
  }
  func.func @transform_0(%arg0: i32) -> (i32, i32, i32) {
    %c0_i32 = arith.constant 0 : i32
    %c0_i32_0 = arith.constant 0 : i32
    %c0_i32_1 = arith.constant 0 : i32
    return %arg0, %c0_i32, %c0_i32_0 : i32, i32, i32
  }
  func.func @transform_1(%arg0: i32) -> (i32, i32, i32) {
    %c0_i32 = arith.constant 0 : i32
    %c0_i32_0 = arith.constant 0 : i32
    %c0_i32_1 = arith.constant 0 : i32
    %c0_i32_2 = arith.constant 0 : i32
    return %c0_i32, %c0_i32_0, %c0_i32_1 : i32, i32, i32
  }
  func.func @transform_2(%arg0: i32) -> (i32, i32) {
    %c0_i32 = arith.constant 0 : i32
    %c0_i32_0 = arith.constant 0 : i32
    %c0_i32_1 = arith.constant 0 : i32
    return %c0_i32, %c0_i32_0 : i32, i32
  }
  func.func @transform_3(%arg0: i32) -> (i32, i32, i32) {
    %c0_i32 = arith.constant 0 : i32
    %c0_i32_0 = arith.constant 0 : i32
    %c0_i32_1 = arith.constant 0 : i32
    return %arg0, %c0_i32, %c0_i32_0 : i32, i32, i32
  }
}

</mosaic_0001>

<llo_original>
// kernel: tpu_custom_call.1
$region0: #{tpu_custom_call.1}
  #allocation0 [shape = 'u32[]', space=smem, size = 0x4, offset = 0x4, fixed_abs, tag = 'smem constant byte address 0x4 - core index']
  #allocation1 [shape = 'u32[144,128]{1,0:T(1,128)}', space=vmem, size = 0x12000, scoped, tag = 'internal scratch']
  %s0 = inlined_call_operand.hbm [shape: f32[2,4,1280], index: 0, kind: input, shape index: {}]
  %s1 = inlined_call_operand.vmem [shape: f32[3,16,4], index: 1, kind: input, shape index: {}]
  %s2 = inlined_call_operand.vmem [shape: f32[16,1], index: 2, kind: input, shape index: {}]
  %s3 = inlined_call_operand.hbm [shape: f32[2,8,1024], index: 3, kind: output, shape index: {}]
  %s4 = sld [smem:[#allocation0]]
  $region26: #{tpu_custom_call.1} parent=0
    _
  %s6 = ssub.s32 1, %s4
  %s7 = scalar_select 0, %s6, %s4
  $region1: #{tpu_custom_call.1} parent=0
    #allocation2 [shape = 'u8[40960]{0}', space=vmem, size = 0xa000, scoped, tag = 'input window, operand 0, single buffered']
    #allocation3 [shape = 's32[1]{0}', space=sflag, size = 0x4, scoped, tag = 'scoped memory for tpu_custom_call.1']
    #allocation4 [shape = 's32[1]{0}', space=sflag, size = 0x4, scoped, tag = 'scoped memory for tpu_custom_call.1']
    #allocation5 [shape = 'u8[65536]{0}', space=vmem, size = 0x10000, scoped, tag = 'output window, operand 0, single buffered']
    %8 = vsyncpa [#allocation3], 0
    %9 = vsyncpa [#allocation4], 0
    // Predicated region
    $region2: #{tpu_custom_call.1} parent=1 // pred_check
      _
    $region3: #{tpu_custom_call.1} parent=1 // pred_check_branch
      %11 = sbr.rel (0) target = $region5
    $region4: #{tpu_custom_call.1} parent=1 // pred_region
      %s13 = ssub.s32 1280, 1280
      %14 = vsyncadd [#allocation3], %s13
      %s15 = sshll.u32 [#allocation2], 4
      %s16 = int_to_ptr.vmem [resolvable:$true] %s15
      %21 = dma.hbm_to_vmem [thread:$0]  %s0, 1280, %s16, [#allocation3], 640, 640, 40
    $region5: #{tpu_custom_call.1} parent=1 // pred_fallthru
      _
    // Predicated region
    $region6: #{tpu_custom_call.1} parent=1 // pred_check
      _
    $region7: #{tpu_custom_call.1} parent=1 // pred_check_branch
      %23 = sbr.rel (0) target = $region9
    $region8: #{tpu_custom_call.1} parent=1 // pred_region
      _
    $region9: #{tpu_custom_call.1} parent=1 // pred_fallthru
      _
    // Predicated region
    $region10: #{tpu_custom_call.1} parent=1 // pred_check
      _
    $region11: #{tpu_custom_call.1} parent=1 // pred_check_branch
      %25 = sbr.rel (0) target = $region13
    $region12: #{tpu_custom_call.1} parent=1 // pred_region
      _
    $region13: #{tpu_custom_call.1} parent=1 // pred_fallthru
      _
    // Predicated region
    $region14: #{tpu_custom_call.1} parent=1 // pred_check
      _
    $region15: #{tpu_custom_call.1} parent=1 // pred_check_branch
      %27 = sbr.rel (0) target = $region17
    $region16: #{tpu_custom_call.1} parent=1 // pred_region
      %28 = dma.done [#allocation3], 1280
    $region17: #{tpu_custom_call.1} parent=1 // pred_fallthru
      _
    %v29 = vld [vmem:[%s2] sm:$0xff]
    %v30 = vld [vmem:[%s2 + $0x8] sm:$0xff]
    %v31 = vld [vmem:[#allocation2] sm:$0xff]
    %v32 = vld [vmem:[#allocation2 + $0x8] sm:$0xff]
    %v33 = vld [vmem:[#allocation2 + $0x10] sm:$0xff]
    %v34 = vld [vmem:[#allocation2 + $0x18] sm:$0xff]
    %v35 = vld [vmem:[#allocation2 + $0x20] sm:$0xff]
    %v36 = vld [vmem:[%s1] sm:$0xff]
    %v37 = vld [vmem:[%s1 + $0x8] sm:$0xff]
    %s38 = scalar_lea.vmem %s1, 16
    %v39 = vld [vmem:[%s38] sm:$0xff]
    %v40 = vld [vmem:[%s38 + $0x8] sm:$0xff]
    %v46 = vcombine.high %v31, %v31
    %v47 = vcombine.high %v32, %v32
    %v48 = vcombine.high %v33, %v33
    %v49 = vcombine.high %v34, %v34
    %vm50 = vcmask 31744
    %v52 = vsel %vm50, %v39, 0
    %v55 = vsel %vm50, %v40, 0
    %vm57 = vcmask 1043456
    %v58 = vsel %vm57, %v46, 0
    %v60 = vsel %vm57, %v32, 0
    %v62 = vsel %vm57, %v47, 0
    %v64 = vsel %vm57, %v33, 0
    %v66 = vsel %vm57, %v48, 0
    %v68 = vsel %vm57, %v34, 0
    %v70 = vsel %vm57, %v49, 0
    %v72 = vsel %vm57, %v35, 0
    %74 = vmatprep.subr.mxu0 %v60
    %75 = vmatpush1.msra.mxu0 %v58
    %76 = vmatprep.subr.mxu0 0.0
    %77 = vmatpush1.msra.mxu0 0.0
    %78 = vmatprep.subr.mxu0 0.0
    %79 = vmatpush1.msra.mxu0 0.0
    %80 = vmatprep.subr.mxu0 0.0
    %81 = vmatpush1.msra.mxu0 0.0
    %82 = vmatprep.subr.mxu0 0.0
    %83 = vmatpush1.msra.mxu0 0.0
    %84 = vmatprep.subr.mxu0 0.0
    %85 = vmatpush1.msra.mxu0 0.0
    %86 = vmatprep.subr.mxu0 0.0
    %87 = vmatpush1.msra.mxu0 0.0
    %88 = vmatprep.subr.mxu0 0.0
    %89 = vmatpush1.msra.mxu0 0.0
    %90 = vmatprep.subr.mxu0 0.0
    %91 = vmatpush1.msra.mxu0 0.0
    %92 = vmatprep.subr.mxu0 0.0
    %93 = vmatpush1.msra.mxu0 0.0
    %94 = vmatprep.subr.mxu0 0.0
    %95 = vmatpush1.msra.mxu0 0.0
    %96 = vmatprep.subr.mxu0 0.0
    %97 = vmatpush1.msra.mxu0 0.0
    %98 = vmatprep.subr.mxu0 0.0
    %99 = vmatpush1.msra.mxu0 0.0
    %100 = vmatprep.subr.mxu0 0.0
    %101 = vmatpush1.msra.mxu0 0.0
    %102 = vmatprep.subr.mxu0 0.0
    %103 = vmatpush1.msra.mxu0 0.0
    %104 = vmatprep.subr.mxu0 0.0
    %105 = vmatpush1.msra.mxu0 0.0
    %106 = vmatprep.subr.mxu0 0.0
    %107 = vmatpush1.msra.mxu0 0.0
    %108 = vmatprep.subr.mxu0 0.0
    %109 = vmatpush1.msra.mxu0 0.0
    %110 = vmatprep.subr.mxu0 0.0
    %111 = vmatpush1.msra.mxu0 0.0
    %112 = vmatprep.subr.mxu0 0.0
    %113 = vmatpush1.msra.mxu0 0.0
    %114 = vmatprep.subr.mxu0 0.0
    %115 = vmatpush1.msra.mxu0 0.0
    %116 = vmatprep.subr.mxu0 0.0
    %117 = vmatpush1.msra.mxu0 0.0
    %118 = vmatprep.subr.mxu0 0.0
    %119 = vmatpush1.msra.mxu0 0.0
    %120 = vmatprep.subr.mxu0 0.0
    %121 = vmatpush1.msra.mxu0 0.0
    %122 = vmatprep.subr.mxu0 0.0
    %123 = vmatpush1.msra.mxu0 0.0
    %124 = vmatprep.subr.mxu0 0.0
    %125 = vmatpush1.msra.mxu0 0.0
    %126 = vmatprep.subr.mxu0 0.0
    %127 = vmatpush1.msra.mxu0 0.0
    %128 = vmatprep.subr.mxu0 0.0
    %129 = vmatpush1.msra.mxu0 0.0
    %130 = vmatprep.subr.mxu0 0.0
    %131 = vmatpush1.msra.mxu0 0.0
    %132 = vmatprep.subr.mxu0 0.0
    %133 = vmatpush1.msra.mxu0 0.0
    %134 = vmatprep.subr.mxu0 0.0
    %135 = vmatpush1.msra.mxu0 0.0
    %136 = vmatprep.subr.mxu0 0.0
    %137 = vmatpush1.msra.mxu0 0.0
    %138 = vmatprep.mubr.f32.mxu0 0.0
    %139 = vmatmul.mubr.f32.gmra.mrb[0].mxu0 %v52
    %v140 = vpop.f32.mrb[0].mxu0
    %v141 = vadd.f32 0.0, %v140
    %v142 = vpop.f32.mrb[0].mxu0
    %v143 = vadd.f32 0.0, %v142
    %144 = vmatprep.mubr.f32.mxu0 0.0
    %145 = vmatmul.mubr.f32.gmra.mrb[0].mxu0 %v55
    %v146 = vpop.f32.mrb[0].mxu0
    %v147 = vadd.f32 0.0, %v146
    %v148 = vpop.f32.mrb[0].mxu0
    %v149 = vadd.f32 0.0, %v148
    %150 = vdwg.mxu0
    %151 = vmatprep.subr.mxu0 %v64
    %152 = vmatpush1.msra.mxu0 %v62
    %153 = vmatprep.subr.mxu0 0.0
    %154 = vmatpush1.msra.mxu0 0.0
    %155 = vmatprep.subr.mxu0 0.0
    %156 = vmatpush1.msra.mxu0 0.0
    %157 = vmatprep.subr.mxu0 0.0
    %158 = vmatpush1.msra.mxu0 0.0
    %159 = vmatprep.subr.mxu0 0.0
    %160 = vmatpush1.msra.mxu0 0.0
    %161 = vmatprep.subr.mxu0 0.0
    %162 = vmatpush1.msra.mxu0 0.0
    %163 = vmatprep.subr.mxu0 0.0
    %164 = vmatpush1.msra.mxu0 0.0
    %165 = vmatprep.subr.mxu0 0.0
    %166 = vmatpush1.msra.mxu0 0.0
    %167 = vmatprep.subr.mxu0 0.0
    %168 = vmatpush1.msra.mxu0 0.0
    %169 = vmatprep.subr.mxu0 0.0
    %170 = vmatpush1.msra.mxu0 0.0
    %171 = vmatprep.subr.mxu0 0.0
    %172 = vmatpush1.msra.mxu0 0.0
    %173 = vmatprep.subr.mxu0 0.0
    %174 = vmatpush1.msra.mxu0 0.0
    %175 = vmatprep.subr.mxu0 0.0
    %176 = vmatpush1.msra.mxu0 0.0
    %177 = vmatprep.subr.mxu0 0.0
    %178 = vmatpush1.msra.mxu0 0.0
    %179 = vmatprep.subr.mxu0 0.0
    %180 = vmatpush1.msra.mxu0 0.0
    %181 = vmatprep.subr.mxu0 0.0
    %182 = vmatpush1.msra.mxu0 0.0
    %183 = vmatprep.subr.mxu0 0.0
    %184 = vmatpush1.msra.mxu0 0.0
    %185 = vmatprep.subr.mxu0 0.0
    %186 = vmatpush1.msra.mxu0 0.0
    %187 = vmatprep.subr.mxu0 0.0
    %188 = vmatpush1.msra.mxu0 0.0
    %189 = vmatprep.subr.mxu0 0.0
    %190 = vmatpush1.msra.mxu0 0.0
    %191 = vmatprep.subr.mxu0 0.0
    %192 = vmatpush1.msra.mxu0 0.0
    %193 = vmatprep.subr.mxu0 0.0
    %194 = vmatpush1.msra.mxu0 0.0
    %195 = vmatprep.subr.mxu0 0.0
    %196 = vmatpush1.msra.mxu0 0.0
    %197 = vmatprep.subr.mxu0 0.0
    %198 = vmatpush1.msra.mxu0 0.0
    %199 = vmatprep.subr.mxu0 0.0
    %200 = vmatpush1.msra.mxu0 0.0
    %201 = vmatprep.subr.mxu0 0.0
    %202 = vmatpush1.msra.mxu0 0.0
    %203 = vmatprep.subr.mxu0 0.0
    %204 = vmatpush1.msra.mxu0 0.0
    %205 = vmatprep.subr.mxu0 0.0
    %206 = vmatpush1.msra.mxu0 0.0
    %207 = vmatprep.subr.mxu0 0.0
    %208 = vmatpush1.msra.mxu0 0.0
    %209 = vmatprep.subr.mxu0 0.0
    %210 = vmatpush1.msra.mxu0 0.0
    %211 = vmatprep.subr.mxu0 0.0
    %212 = vmatpush1.msra.mxu0 0.0
    %213 = vmatprep.subr.mxu0 0.0
    %214 = vmatpush1.msra.mxu0 0.0
    %215 = vmatprep.mubr.f32.mxu0 0.0
    %216 = vmatmul.mubr.f32.gmra.mrb[0].mxu0 %v52
    %v217 = vpop.f32.mrb[0].mxu0
    %v218 = vadd.f32 0.0, %v217
    %v219 = vpop.f32.mrb[0].mxu0
    %v220 = vadd.f32 0.0, %v219
    %221 = vmatprep.mubr.f32.mxu0 0.0
    %222 = vmatmul.mubr.f32.gmra.mrb[0].mxu0 %v55
    %v223 = vpop.f32.mrb[0].mxu0
    %v224 = vadd.f32 0.0, %v223
    %v225 = vpop.f32.mrb[0].mxu0
    %v226 = vadd.f32 0.0, %v225
    %227 = vdwg.mxu0
    %228 = vmatprep.subr.mxu0 %v68
    %229 = vmatpush1.msra.mxu0 %v66
    %230 = vmatprep.subr.mxu0 0.0
    %231 = vmatpush1.msra.mxu0 0.0
    %232 = vmatprep.subr.mxu0 0.0
    %233 = vmatpush1.msra.mxu0 0.0
    %234 = vmatprep.subr.mxu0 0.0
    %235 = vmatpush1.msra.mxu0 0.0
    %236 = vmatprep.subr.mxu0 0.0
    %237 = vmatpush1.msra.mxu0 0.0
    %238 = vmatprep.subr.mxu0 0.0
    %239 = vmatpush1.msra.mxu0 0.0
    %240 = vmatprep.subr.mxu0 0.0
    %241 = vmatpush1.msra.mxu0 0.0
    %242 = vmatprep.subr.mxu0 0.0
    %243 = vmatpush1.msra.mxu0 0.0
    %244 = vmatprep.subr.mxu0 0.0
    %245 = vmatpush1.msra.mxu0 0.0
    %246 = vmatprep.subr.mxu0 0.0
    %247 = vmatpush1.msra.mxu0 0.0
    %248 = vmatprep.subr.mxu0 0.0
    %249 = vmatpush1.msra.mxu0 0.0
    %250 = vmatprep.subr.mxu0 0.0
    %251 = vmatpush1.msra.mxu0 0.0
    %252 = vmatprep.subr.mxu0 0.0
    %253 = vmatpush1.msra.mxu0 0.0
    %254 = vmatprep.subr.mxu0 0.0
    %255 = vmatpush1.msra.mxu0 0.0
    %256 = vmatprep.subr.mxu0 0.0
    %257 = vmatpush1.msra.mxu0 0.0
    %258 = vmatprep.subr.mxu0 0.0
    %259 = vmatpush1.msra.mxu0 0.0
    %260 = vmatprep.subr.mxu0 0.0
    %261 = vmatpush1.msra.mxu0 0.0
    %262 = vmatprep.subr.mxu0 0.0
    %263 = vmatpush1.msra.mxu0 0.0
    %264 = vmatprep.subr.mxu0 0.0
    %265 = vmatpush1.msra.mxu0 0.0
    %266 = vmatprep.subr.mxu0 0.0
    %267 = vmatpush1.msra.mxu0 0.0
    %268 = vmatprep.subr.mxu0 0.0
    %269 = vmatpush1.msra.mxu0 0.0
    %270 = vmatprep.subr.mxu0 0.0
    %271 = vmatpush1.msra.mxu0 0.0
    %272 = vmatprep.subr.mxu0 0.0
    %273 = vmatpush1.msra.mxu0 0.0
    %274 = vmatprep.subr.mxu0 0.0
    %275 = vmatpush1.msra.mxu0 0.0
    %276 = vmatprep.subr.mxu0 0.0
    %277 = vmatpush1.msra.mxu0 0.0
    %278 = vmatprep.subr.mxu0 0.0
    %279 = vmatpush1.msra.mxu0 0.0
    %280 = vmatprep.subr.mxu0 0.0
    %281 = vmatpush1.msra.mxu0 0.0
    %282 = vmatprep.subr.mxu0 0.0
    %283 = vmatpush1.msra.mxu0 0.0
    %284 = vmatprep.subr.mxu0 0.0
    %285 = vmatpush1.msra.mxu0 0.0
    %286 = vmatprep.subr.mxu0 0.0
    %287 = vmatpush1.msra.mxu0 0.0
    %288 = vmatprep.subr.mxu0 0.0
    %289 = vmatpush1.msra.mxu0 0.0
    %290 = vmatprep.subr.mxu0 0.0
    %291 = vmatpush1.msra.mxu0 0.0
    %292 = vmatprep.mubr.f32.mxu0 0.0
    %293 = vmatmul.mubr.f32.gmra.mrb[0].mxu0 %v52
    %v294 = vpop.f32.mrb[0].mxu0
    %v295 = vadd.f32 0.0, %v294
    %v296 = vpop.f32.mrb[0].mxu0
    %v297 = vadd.f32 0.0, %v296
    %298 = vmatprep.mubr.f32.mxu0 0.0
    %299 = vmatmul.mubr.f32.gmra.mrb[0].mxu0 %v55
    %v300 = vpop.f32.mrb[0].mxu0
    %v301 = vadd.f32 0.0, %v300
    %v302 = vpop.f32.mrb[0].mxu0
    %v303 = vadd.f32 0.0, %v302
    %304 = vdwg.mxu0
    %305 = vmatprep.subr.mxu0 %v72
    %306 = vmatpush1.msra.mxu0 %v70
    %307 = vmatprep.subr.mxu0 0.0
    %308 = vmatpush1.msra.mxu0 0.0
    %309 = vmatprep.subr.mxu0 0.0
    %310 = vmatpush1.msra.mxu0 0.0
    %311 = vmatprep.subr.mxu0 0.0
    %312 = vmatpush1.msra.mxu0 0.0
    %313 = vmatprep.subr.mxu0 0.0
    %314 = vmatpush1.msra.mxu0 0.0
    %315 = vmatprep.subr.mxu0 0.0
    %316 = vmatpush1.msra.mxu0 0.0
    %317 = vmatprep.subr.mxu0 0.0
    %318 = vmatpush1.msra.mxu0 0.0
    %319 = vmatprep.subr.mxu0 0.0
    %320 = vmatpush1.msra.mxu0 0.0
    %321 = vmatprep.subr.mxu0 0.0
    %322 = vmatpush1.msra.mxu0 0.0
    %323 = vmatprep.subr.mxu0 0.0
    %324 = vmatpush1.msra.mxu0 0.0
    %325 = vmatprep.subr.mxu0 0.0
    %326 = vmatpush1.msra.mxu0 0.0
    %327 = vmatprep.subr.mxu0 0.0
    %328 = vmatpush1.msra.mxu0 0.0
    %329 = vmatprep.subr.mxu0 0.0
    %330 = vmatpush1.msra.mxu0 0.0
    %331 = vmatprep.subr.mxu0 0.0
    %332 = vmatpush1.msra.mxu0 0.0
    %333 = vmatprep.subr.mxu0 0.0
    %334 = vmatpush1.msra.mxu0 0.0
    %335 = vmatprep.subr.mxu0 0.0
    %336 = vmatpush1.msra.mxu0 0.0
    %337 = vmatprep.subr.mxu0 0.0
    %338 = vmatpush1.msra.mxu0 0.0
    %339 = vmatprep.subr.mxu0 0.0
    %340 = vmatpush1.msra.mxu0 0.0
    %341 = vmatprep.subr.mxu0 0.0
    %342 = vmatpush1.msra.mxu0 0.0
    %343 = vmatprep.subr.mxu0 0.0
    %344 = vmatpush1.msra.mxu0 0.0
    %345 = vmatprep.subr.mxu0 0.0
    %346 = vmatpush1.msra.mxu0 0.0
    %347 = vmatprep.subr.mxu0 0.0
    %348 = vmatpush1.msra.mxu0 0.0
    %349 = vmatprep.subr.mxu0 0.0
    %350 = vmatpush1.msra.mxu0 0.0
    %351 = vmatprep.subr.mxu0 0.0
    %352 = vmatpush1.msra.mxu0 0.0
    %353 = vmatprep.subr.mxu0 0.0
    %354 = vmatpush1.msra.mxu0 0.0
    %355 = vmatprep.subr.mxu0 0.0
    %356 = vmatpush1.msra.mxu0 0.0
    %357 = vmatprep.subr.mxu0 0.0
    %358 = vmatpush1.msra.mxu0 0.0
    %359 = vmatprep.subr.mxu0 0.0
    %360 = vmatpush1.msra.mxu0 0.0
    %361 = vmatprep.subr.mxu0 0.0
    %362 = vmatpush1.msra.mxu0 0.0
    %363 = vmatprep.subr.mxu0 0.0
    %364 = vmatpush1.msra.mxu0 0.0
    %365 = vmatprep.subr.mxu0 0.0
    %366 = vmatpush1.msra.mxu0 0.0
    %367 = vmatprep.subr.mxu0 0.0
    %368 = vmatpush1.msra.mxu0 0.0
    %369 = vmatprep.mubr.f32.mxu0 0.0
    %370 = vmatmul.mubr.f32.gmra.mrb[0].mxu0 %v52
    %v371 = vpop.f32.mrb[0].mxu0
    %v372 = vadd.f32 0.0, %v371
    %v373 = vpop.f32.mrb[0].mxu0
    %v374 = vadd.f32 0.0, %v373
    %375 = vmatprep.mubr.f32.mxu0 0.0
    %376 = vmatmul.mubr.f32.gmra.mrb[0].mxu0 %v55
    %v377 = vpop.f32.mrb[0].mxu0
    %v378 = vadd.f32 0.0, %v377
    %v379 = vpop.f32.mrb[0].mxu0
    %v380 = vadd.f32 0.0, %v379
    %381 = vdwg.mxu0
    %v383 = vsel %vm50, %v36, 0
    %v386 = vsel %vm50, %v37, 0
    %v388 = vsel %vm57, %v31, 0
    %390 = vmatprep.subr.mxu0 %v58
    %391 = vmatpush1.msra.mxu0 %v388
    %392 = vmatprep.subr.mxu0 0.0
    %393 = vmatpush1.msra.mxu0 0.0
    %394 = vmatprep.subr.mxu0 0.0
    %395 = vmatpush1.msra.mxu0 0.0
    %396 = vmatprep.subr.mxu0 0.0
    %397 = vmatpush1.msra.mxu0 0.0
    %398 = vmatprep.subr.mxu0 0.0
    %399 = vmatpush1.msra.mxu0 0.0
    %400 = vmatprep.subr.mxu0 0.0
    %401 = vmatpush1.msra.mxu0 0.0
    %402 = vmatprep.subr.mxu0 0.0
    %403 = vmatpush1.msra.mxu0 0.0
    %404 = vmatprep.subr.mxu0 0.0
    %405 = vmatpush1.msra.mxu0 0.0
    %406 = vmatprep.subr.mxu0 0.0
    %407 = vmatpush1.msra.mxu0 0.0
    %408 = vmatprep.subr.mxu0 0.0
    %409 = vmatpush1.msra.mxu0 0.0
    %410 = vmatprep.subr.mxu0 0.0
    %411 = vmatpush1.msra.mxu0 0.0
    %412 = vmatprep.subr.mxu0 0.0
    %413 = vmatpush1.msra.mxu0 0.0
    %414 = vmatprep.subr.mxu0 0.0
    %415 = vmatpush1.msra.mxu0 0.0
    %416 = vmatprep.subr.mxu0 0.0
    %417 = vmatpush1.msra.mxu0 0.0
    %418 = vmatprep.subr.mxu0 0.0
    %419 = vmatpush1.msra.mxu0 0.0
    %420 = vmatprep.subr.mxu0 0.0
    %421 = vmatpush1.msra.mxu0 0.0
    %422 = vmatprep.subr.mxu0 0.0
    %423 = vmatpush1.msra.mxu0 0.0
    %424 = vmatprep.subr.mxu0 0.0
    %425 = vmatpush1.msra.mxu0 0.0
    %426 = vmatprep.subr.mxu0 0.0
    %427 = vmatpush1.msra.mxu0 0.0
    %428 = vmatprep.subr.mxu0 0.0
    %429 = vmatpush1.msra.mxu0 0.0
    %430 = vmatprep.subr.mxu0 0.0
    %431 = vmatpush1.msra.mxu0 0.0
    %432 = vmatprep.subr.mxu0 0.0
    %433 = vmatpush1.msra.mxu0 0.0
    %434 = vmatprep.subr.mxu0 0.0
    %435 = vmatpush1.msra.mxu0 0.0
    %436 = vmatprep.subr.mxu0 0.0
    %437 = vmatpush1.msra.mxu0 0.0
    %438 = vmatprep.subr.mxu0 0.0
    %439 = vmatpush1.msra.mxu0 0.0
    %440 = vmatprep.subr.mxu0 0.0
    %441 = vmatpush1.msra.mxu0 0.0
    %442 = vmatprep.subr.mxu0 0.0
    %443 = vmatpush1.msra.mxu0 0.0
    %444 = vmatprep.subr.mxu0 0.0
    %445 = vmatpush1.msra.mxu0 0.0
    %446 = vmatprep.subr.mxu0 0.0
    %447 = vmatpush1.msra.mxu0 0.0
    %448 = vmatprep.subr.mxu0 0.0
    %449 = vmatpush1.msra.mxu0 0.0
    %450 = vmatprep.subr.mxu0 0.0
    %451 = vmatpush1.msra.mxu0 0.0
    %452 = vmatprep.subr.mxu0 0.0
    %453 = vmatpush1.msra.mxu0 0.0
    %454 = vmatprep.mubr.f32.mxu0 0.0
    %455 = vmatmul.mubr.f32.gmra.mrb[0].mxu0 %v383
    %v456 = vpop.f32.mrb[0].mxu0
    %v457 = vadd.f32 %v141, %v456
    %v458 = vpop.f32.mrb[0].mxu0
    %v459 = vadd.f32 %v143, %v458
    %460 = vmatprep.mubr.f32.mxu0 0.0
    %461 = vmatmul.mubr.f32.gmra.mrb[0].mxu0 %v386
    %v462 = vpop.f32.mrb[0].mxu0
    %v463 = vadd.f32 %v147, %v462
    %v464 = vpop.f32.mrb[0].mxu0
    %v465 = vadd.f32 %v149, %v464
    %466 = vdwg.mxu0
    %467 = vmatprep.subr.mxu0 %v62
    %468 = vmatpush1.msra.mxu0 %v60
    %469 = vmatprep.subr.mxu0 0.0
    %470 = vmatpush1.msra.mxu0 0.0
    %471 = vmatprep.subr.mxu0 0.0
    %472 = vmatpush1.msra.mxu0 0.0
    %473 = vmatprep.subr.mxu0 0.0
    %474 = vmatpush1.msra.mxu0 0.0
    %475 = vmatprep.subr.mxu0 0.0
    %476 = vmatpush1.msra.mxu0 0.0
    %477 = vmatprep.subr.mxu0 0.0
    %478 = vmatpush1.msra.mxu0 0.0
    %479 = vmatprep.subr.mxu0 0.0
    %480 = vmatpush1.msra.mxu0 0.0
    %481 = vmatprep.subr.mxu0 0.0
    %482 = vmatpush1.msra.mxu0 0.0
    %483 = vmatprep.subr.mxu0 0.0
    %484 = vmatpush1.msra.mxu0 0.0
    %485 = vmatprep.subr.mxu0 0.0
    %486 = vmatpush1.msra.mxu0 0.0
    %487 = vmatprep.subr.mxu0 0.0
    %488 = vmatpush1.msra.mxu0 0.0
    %489 = vmatprep.subr.mxu0 0.0
    %490 = vmatpush1.msra.mxu0 0.0
    %491 = vmatprep.subr.mxu0 0.0
    %492 = vmatpush1.msra.mxu0 0.0
    %493 = vmatprep.subr.mxu0 0.0
    %494 = vmatpush1.msra.mxu0 0.0
    %495 = vmatprep.subr.mxu0 0.0
    %496 = vmatpush1.msra.mxu0 0.0
    %497 = vmatprep.subr.mxu0 0.0
    %498 = vmatpush1.msra.mxu0 0.0
    %499 = vmatprep.subr.mxu0 0.0
    %500 = vmatpush1.msra.mxu0 0.0
    %501 = vmatprep.subr.mxu0 0.0
    %502 = vmatpush1.msra.mxu0 0.0
    %503 = vmatprep.subr.mxu0 0.0
    %504 = vmatpush1.msra.mxu0 0.0
    %505 = vmatprep.subr.mxu0 0.0
    %506 = vmatpush1.msra.mxu0 0.0
    %507 = vmatprep.subr.mxu0 0.0
    %508 = vmatpush1.msra.mxu0 0.0
    %509 = vmatprep.subr.mxu0 0.0
    %510 = vmatpush1.msra.mxu0 0.0
    %511 = vmatprep.subr.mxu0 0.0
    %512 = vmatpush1.msra.mxu0 0.0
    %513 = vmatprep.subr.mxu0 0.0
    %514 = vmatpush1.msra.mxu0 0.0
    %515 = vmatprep.subr.mxu0 0.0
    %516 = vmatpush1.msra.mxu0 0.0
    %517 = vmatprep.subr.mxu0 0.0
    %518 = vmatpush1.msra.mxu0 0.0
    %519 = vmatprep.subr.mxu0 0.0
    %520 = vmatpush1.msra.mxu0 0.0
    %521 = vmatprep.subr.mxu0 0.0
    %522 = vmatpush1.msra.mxu0 0.0
    %523 = vmatprep.subr.mxu0 0.0
    %524 = vmatpush1.msra.mxu0 0.0
    %525 = vmatprep.subr.mxu0 0.0
    %526 = vmatpush1.msra.mxu0 0.0
    %527 = vmatprep.subr.mxu0 0.0
    %528 = vmatpush1.msra.mxu0 0.0
    %529 = vmatprep.subr.mxu0 0.0
    %530 = vmatpush1.msra.mxu0 0.0
    %531 = vmatprep.mubr.f32.mxu0 0.0
    %532 = vmatmul.mubr.f32.gmra.mrb[0].mxu0 %v383
    %v533 = vpop.f32.mrb[0].mxu0
    %v534 = vadd.f32 %v218, %v533
    %v535 = vpop.f32.mrb[0].mxu0
    %v536 = vadd.f32 %v220, %v535
    %537 = vmatprep.mubr.f32.mxu0 0.0
    %538 = vmatmul.mubr.f32.gmra.mrb[0].mxu0 %v386
    %v539 = vpop.f32.mrb[0].mxu0
    %v540 = vadd.f32 %v224, %v539
    %v541 = vpop.f32.mrb[0].mxu0
    %v542 = vadd.f32 %v226, %v541
    %543 = vdwg.mxu0
    %544 = vmatprep.subr.mxu0 %v66
    %545 = vmatpush1.msra.mxu0 %v64
    %546 = vmatprep.subr.mxu0 0.0
    %547 = vmatpush1.msra.mxu0 0.0
    %548 = vmatprep.subr.mxu0 0.0
    %549 = vmatpush1.msra.mxu0 0.0
    %550 = vmatprep.subr.mxu0 0.0
    %551 = vmatpush1.msra.mxu0 0.0
    %552 = vmatprep.subr.mxu0 0.0
    %553 = vmatpush1.msra.mxu0 0.0
    %554 = vmatprep.subr.mxu0 0.0
    %555 = vmatpush1.msra.mxu0 0.0
    %556 = vmatprep.subr.mxu0 0.0
    %557 = vmatpush1.msra.mxu0 0.0
    %558 = vmatprep.subr.mxu0 0.0
    %559 = vmatpush1.msra.mxu0 0.0
    %560 = vmatprep.subr.mxu0 0.0
    %561 = vmatpush1.msra.mxu0 0.0
    %562 = vmatprep.subr.mxu0 0.0
    %563 = vmatpush1.msra.mxu0 0.0
    %564 = vmatprep.subr.mxu0 0.0
    %565 = vmatpush1.msra.mxu0 0.0
    %566 = vmatprep.subr.mxu0 0.0
    %567 = vmatpush1.msra.mxu0 0.0
    %568 = vmatprep.subr.mxu0 0.0
    %569 = vmatpush1.msra.mxu0 0.0
    %570 = vmatprep.subr.mxu0 0.0
    %571 = vmatpush1.msra.mxu0 0.0
    %572 = vmatprep.subr.mxu0 0.0
    %573 = vmatpush1.msra.mxu0 0.0
    %574 = vmatprep.subr.mxu0 0.0
    %575 = vmatpush1.msra.mxu0 0.0
    %576 = vmatprep.subr.mxu0 0.0
    %577 = vmatpush1.msra.mxu0 0.0
    %578 = vmatprep.subr.mxu0 0.0
    %579 = vmatpush1.msra.mxu0 0.0
    %580 = vmatprep.subr.mxu0 0.0
    %581 = vmatpush1.msra.mxu0 0.0
    %582 = vmatprep.subr.mxu0 0.0
    %583 = vmatpush1.msra.mxu0 0.0
    %584 = vmatprep.subr.mxu0 0.0
    %585 = vmatpush1.msra.mxu0 0.0
    %586 = vmatprep.subr.mxu0 0.0
    %587 = vmatpush1.msra.mxu0 0.0
    %588 = vmatprep.subr.mxu0 0.0
    %589 = vmatpush1.msra.mxu0 0.0
    %590 = vmatprep.subr.mxu0 0.0
    %591 = vmatpush1.msra.mxu0 0.0
    %592 = vmatprep.subr.mxu0 0.0
    %593 = vmatpush1.msra.mxu0 0.0
    %594 = vmatprep.subr.mxu0 0.0
    %595 = vmatpush1.msra.mxu0 0.0
    %596 = vmatprep.subr.mxu0 0.0
    %597 = vmatpush1.msra.mxu0 0.0
    %598 = vmatprep.subr.mxu0 0.0
    %599 = vmatpush1.msra.mxu0 0.0
    %600 = vmatprep.subr.mxu0 0.0
    %601 = vmatpush1.msra.mxu0 0.0
    %602 = vmatprep.subr.mxu0 0.0
    %603 = vmatpush1.msra.mxu0 0.0
    %604 = vmatprep.subr.mxu0 0.0
    %605 = vmatpush1.msra.mxu0 0.0
    %606 = vmatprep.subr.mxu0 0.0
    %607 = vmatpush1.msra.mxu0 0.0
    %608 = vmatprep.mubr.f32.mxu0 0.0
    %609 = vmatmul.mubr.f32.gmra.mrb[0].mxu0 %v383
    %v610 = vpop.f32.mrb[0].mxu0
    %v611 = vadd.f32 %v295, %v610
    %v612 = vpop.f32.mrb[0].mxu0
    %v613 = vadd.f32 %v297, %v612
    %614 = vmatprep.mubr.f32.mxu0 0.0
    %615 = vmatmul.mubr.f32.gmra.mrb[0].mxu0 %v386
    %v616 = vpop.f32.mrb[0].mxu0
    %v617 = vadd.f32 %v301, %v616
    %v618 = vpop.f32.mrb[0].mxu0
    %v619 = vadd.f32 %v303, %v618
    %620 = vdwg.mxu0
    %621 = vmatprep.subr.mxu0 %v70
    %622 = vmatpush1.msra.mxu0 %v68
    %623 = vmatprep.subr.mxu0 0.0
    %624 = vmatpush1.msra.mxu0 0.0
    %625 = vmatprep.subr.mxu0 0.0
    %626 = vmatpush1.msra.mxu0 0.0
    %627 = vmatprep.subr.mxu0 0.0
    %628 = vmatpush1.msra.mxu0 0.0
    %629 = vmatprep.subr.mxu0 0.0
    %630 = vmatpush1.msra.mxu0 0.0
    %631 = vmatprep.subr.mxu0 0.0
    %632 = vmatpush1.msra.mxu0 0.0
    %633 = vmatprep.subr.mxu0 0.0
    %634 = vmatpush1.msra.mxu0 0.0
    %635 = vmatprep.subr.mxu0 0.0
    %636 = vmatpush1.msra.mxu0 0.0
    %637 = vmatprep.subr.mxu0 0.0
    %638 = vmatpush1.msra.mxu0 0.0
    %639 = vmatprep.subr.mxu0 0.0
    %640 = vmatpush1.msra.mxu0 0.0
    %641 = vmatprep.subr.mxu0 0.0
    %642 = vmatpush1.msra.mxu0 0.0
    %643 = vmatprep.subr.mxu0 0.0
    %644 = vmatpush1.msra.mxu0 0.0
    %645 = vmatprep.subr.mxu0 0.0
    %646 = vmatpush1.msra.mxu0 0.0
    %647 = vmatprep.subr.mxu0 0.0
    %648 = vmatpush1.msra.mxu0 0.0
    %649 = vmatprep.subr.mxu0 0.0
    %650 = vmatpush1.msra.mxu0 0.0
    %651 = vmatprep.subr.mxu0 0.0
    %652 = vmatpush1.msra.mxu0 0.0
    %653 = vmatprep.subr.mxu0 0.0
    %654 = vmatpush1.msra.mxu0 0.0
    %655 = vmatprep.subr.mxu0 0.0
    %656 = vmatpush1.msra.mxu0 0.0
    %657 = vmatprep.subr.mxu0 0.0
    %658 = vmatpush1.msra.mxu0 0.0
    %659 = vmatprep.subr.mxu0 0.0
    %660 = vmatpush1.msra.mxu0 0.0
    %661 = vmatprep.subr.mxu0 0.0
    %662 = vmatpush1.msra.mxu0 0.0
    %663 = vmatprep.subr.mxu0 0.0
    %664 = vmatpush1.msra.mxu0 0.0
    %665 = vmatprep.subr.mxu0 0.0
    %666 = vmatpush1.msra.mxu0 0.0
    %667 = vmatprep.subr.mxu0 0.0
    %668 = vmatpush1.msra.mxu0 0.0
    %669 = vmatprep.subr.mxu0 0.0
    %670 = vmatpush1.msra.mxu0 0.0
    %671 = vmatprep.subr.mxu0 0.0
    %672 = vmatpush1.msra.mxu0 0.0
    %673 = vmatprep.subr.mxu0 0.0
    %674 = vmatpush1.msra.mxu0 0.0
    %675 = vmatprep.subr.mxu0 0.0
    %676 = vmatpush1.msra.mxu0 0.0
    %677 = vmatprep.subr.mxu0 0.0
    %678 = vmatpush1.msra.mxu0 0.0
    %679 = vmatprep.subr.mxu0 0.0
    %680 = vmatpush1.msra.mxu0 0.0
    %681 = vmatprep.subr.mxu0 0.0
    %682 = vmatpush1.msra.mxu0 0.0
    %683 = vmatprep.subr.mxu0 0.0
    %684 = vmatpush1.msra.mxu0 0.0
    %685 = vmatprep.mubr.f32.mxu0 0.0
    %686 = vmatmul.mubr.f32.gmra.mrb[0].mxu0 %v383
    %v687 = vpop.f32.mrb[0].mxu0
    %v688 = vadd.f32 %v372, %v687
    %v689 = vpop.f32.mrb[0].mxu0
    %v690 = vadd.f32 %v374, %v689
    %691 = vmatprep.mubr.f32.mxu0 0.0
    %692 = vmatmul.mubr.f32.gmra.mrb[0].mxu0 %v386
    %v693 = vpop.f32.mrb[0].mxu0
    %v694 = vadd.f32 %v378, %v693
    %v695 = vpop.f32.mrb[0].mxu0
    %v696 = vadd.f32 %v380, %v695
    %697 = vdwg.mxu0
    %s698 = scalar_lea.vmem %s1, 32
    %v699 = vld [vmem:[%s698] sm:$0xff]
    %v700 = vld [vmem:[%s698 + $0x8] sm:$0xff]
    %v701 = vcombine.high %v35, %v35
    %v703 = vsel %vm50, %v699, 0
    %v706 = vsel %vm50, %v700, 0
    %v708 = vsel %vm57, %v701, 0
    %710 = vmatprep.subr.mxu0 %v62
    %711 = vmatpush1.msra.mxu0 %v60
    %712 = vmatprep.subr.mxu0 0.0
    %713 = vmatpush1.msra.mxu0 0.0
    %714 = vmatprep.subr.mxu0 0.0
    %715 = vmatpush1.msra.mxu0 0.0
    %716 = vmatprep.subr.mxu0 0.0
    %717 = vmatpush1.msra.mxu0 0.0
    %718 = vmatprep.subr.mxu0 0.0
    %719 = vmatpush1.msra.mxu0 0.0
    %720 = vmatprep.subr.mxu0 0.0
    %721 = vmatpush1.msra.mxu0 0.0
    %722 = vmatprep.subr.mxu0 0.0
    %723 = vmatpush1.msra.mxu0 0.0
    %724 = vmatprep.subr.mxu0 0.0
    %725 = vmatpush1.msra.mxu0 0.0
    %726 = vmatprep.subr.mxu0 0.0
    %727 = vmatpush1.msra.mxu0 0.0
    %728 = vmatprep.subr.mxu0 0.0
    %729 = vmatpush1.msra.mxu0 0.0
    %730 = vmatprep.subr.mxu0 0.0
    %731 = vmatpush1.msra.mxu0 0.0
    %732 = vmatprep.subr.mxu0 0.0
    %733 = vmatpush1.msra.mxu0 0.0
    %734 = vmatprep.subr.mxu0 0.0
    %735 = vmatpush1.msra.mxu0 0.0
    %736 = vmatprep.subr.mxu0 0.0
    %737 = vmatpush1.msra.mxu0 0.0
    %738 = vmatprep.subr.mxu0 0.0
    %739 = vmatpush1.msra.mxu0 0.0
    %740 = vmatprep.subr.mxu0 0.0
    %741 = vmatpush1.msra.mxu0 0.0
    %742 = vmatprep.subr.mxu0 0.0
    %743 = vmatpush1.msra.mxu0 0.0
    %744 = vmatprep.subr.mxu0 0.0
    %745 = vmatpush1.msra.mxu0 0.0
    %746 = vmatprep.subr.mxu0 0.0
    %747 = vmatpush1.msra.mxu0 0.0
    %748 = vmatprep.subr.mxu0 0.0
    %749 = vmatpush1.msra.mxu0 0.0
    %750 = vmatprep.subr.mxu0 0.0
    %751 = vmatpush1.msra.mxu0 0.0
    %752 = vmatprep.subr.mxu0 0.0
    %753 = vmatpush1.msra.mxu0 0.0
    %754 = vmatprep.subr.mxu0 0.0
    %755 = vmatpush1.msra.mxu0 0.0
    %756 = vmatprep.subr.mxu0 0.0
    %757 = vmatpush1.msra.mxu0 0.0
    %758 = vmatprep.subr.mxu0 0.0
    %759 = vmatpush1.msra.mxu0 0.0
    %760 = vmatprep.subr.mxu0 0.0
    %761 = vmatpush1.msra.mxu0 0.0
    %762 = vmatprep.subr.mxu0 0.0
    %763 = vmatpush1.msra.mxu0 0.0
    %764 = vmatprep.subr.mxu0 0.0
    %765 = vmatpush1.msra.mxu0 0.0
    %766 = vmatprep.subr.mxu0 0.0
    %767 = vmatpush1.msra.mxu0 0.0
    %768 = vmatprep.subr.mxu0 0.0
    %769 = vmatpush1.msra.mxu0 0.0
    %770 = vmatprep.subr.mxu0 0.0
    %771 = vmatpush1.msra.mxu0 0.0
    %772 = vmatprep.subr.mxu0 0.0
    %773 = vmatpush1.msra.mxu0 0.0
    %774 = vmatprep.mubr.f32.mxu0 0.0
    %775 = vmatmul.mubr.f32.gmra.mrb[0].mxu0 %v703
    %v776 = vpop.f32.mrb[0].mxu0
    %v777 = vadd.f32 0.0, %v776
    %v778 = vpop.f32.mrb[0].mxu0
    %v779 = vadd.f32 0.0, %v778
    %780 = vmatprep.mubr.f32.mxu0 0.0
    %781 = vmatmul.mubr.f32.gmra.mrb[0].mxu0 %v706
    %v782 = vpop.f32.mrb[0].mxu0
    %v783 = vadd.f32 0.0, %v782
    %v784 = vpop.f32.mrb[0].mxu0
    %v785 = vadd.f32 0.0, %v784
    %786 = vdwg.mxu0
    %787 = vmatprep.subr.mxu0 %v66
    %788 = vmatpush1.msra.mxu0 %v64
    %789 = vmatprep.subr.mxu0 0.0
    %790 = vmatpush1.msra.mxu0 0.0
    %791 = vmatprep.subr.mxu0 0.0
    %792 = vmatpush1.msra.mxu0 0.0
    %793 = vmatprep.subr.mxu0 0.0
    %794 = vmatpush1.msra.mxu0 0.0
    %795 = vmatprep.subr.mxu0 0.0
    %796 = vmatpush1.msra.mxu0 0.0
    %797 = vmatprep.subr.mxu0 0.0
    %798 = vmatpush1.msra.mxu0 0.0
    %799 = vmatprep.subr.mxu0 0.0
    %800 = vmatpush1.msra.mxu0 0.0
    %801 = vmatprep.subr.mxu0 0.0
    %802 = vmatpush1.msra.mxu0 0.0
    %803 = vmatprep.subr.mxu0 0.0
    %804 = vmatpush1.msra.mxu0 0.0
    %805 = vmatprep.subr.mxu0 0.0
    %806 = vmatpush1.msra.mxu0 0.0
    %807 = vmatprep.subr.mxu0 0.0
    %808 = vmatpush1.msra.mxu0 0.0
    %809 = vmatprep.subr.mxu0 0.0
    %810 = vmatpush1.msra.mxu0 0.0
    %811 = vmatprep.subr.mxu0 0.0
    %812 = vmatpush1.msra.mxu0 0.0
    %813 = vmatprep.subr.mxu0 0.0
    %814 = vmatpush1.msra.mxu0 0.0
    %815 = vmatprep.subr.mxu0 0.0
    %816 = vmatpush1.msra.mxu0 0.0
    %817 = vmatprep.subr.mxu0 0.0
    %818 = vmatpush1.msra.mxu0 0.0
    %819 = vmatprep.subr.mxu0 0.0
    %820 = vmatpush1.msra.mxu0 0.0
    %821 = vmatprep.subr.mxu0 0.0
    %822 = vmatpush1.msra.mxu0 0.0
    %823 = vmatprep.subr.mxu0 0.0
    %824 = vmatpush1.msra.mxu0 0.0
    %825 = vmatprep.subr.mxu0 0.0
    %826 = vmatpush1.msra.mxu0 0.0
    %827 = vmatprep.subr.mxu0 0.0
    %828 = vmatpush1.msra.mxu0 0.0
    %829 = vmatprep.subr.mxu0 0.0
    %830 = vmatpush1.msra.mxu0 0.0
    %831 = vmatprep.subr.mxu0 0.0
    %832 = vmatpush1.msra.mxu0 0.0
    %833 = vmatprep.subr.mxu0 0.0
    %834 = vmatpush1.msra.mxu0 0.0
    %835 = vmatprep.subr.mxu0 0.0
    %836 = vmatpush1.msra.mxu0 0.0
    %837 = vmatprep.subr.mxu0 0.0
    %838 = vmatpush1.msra.mxu0 0.0
    %839 = vmatprep.subr.mxu0 0.0
    %840 = vmatpush1.msra.mxu0 0.0
    %841 = vmatprep.subr.mxu0 0.0
    %842 = vmatpush1.msra.mxu0 0.0
    %843 = vmatprep.subr.mxu0 0.0
    %844 = vmatpush1.msra.mxu0 0.0
    %845 = vmatprep.subr.mxu0 0.0
    %846 = vmatpush1.msra.mxu0 0.0
    %847 = vmatprep.subr.mxu0 0.0
    %848 = vmatpush1.msra.mxu0 0.0
    %849 = vmatprep.subr.mxu0 0.0
    %850 = vmatpush1.msra.mxu0 0.0
    %851 = vmatprep.mubr.f32.mxu0 0.0
    %852 = vmatmul.mubr.f32.gmra.mrb[0].mxu0 %v703
    %v853 = vpop.f32.mrb[0].mxu0
    %v854 = vadd.f32 0.0, %v853
    %v855 = vpop.f32.mrb[0].mxu0
    %v856 = vadd.f32 0.0, %v855
    %857 = vmatprep.mubr.f32.mxu0 0.0
    %858 = vmatmul.mubr.f32.gmra.mrb[0].mxu0 %v706
    %v859 = vpop.f32.mrb[0].mxu0
    %v860 = vadd.f32 0.0, %v859
    %v861 = vpop.f32.mrb[0].mxu0
    %v862 = vadd.f32 0.0, %v861
    %863 = vdwg.mxu0
    %864 = vmatprep.subr.mxu0 %v70
    %865 = vmatpush1.msra.mxu0 %v68
    %866 = vmatprep.subr.mxu0 0.0
    %867 = vmatpush1.msra.mxu0 0.0
    %868 = vmatprep.subr.mxu0 0.0
    %869 = vmatpush1.msra.mxu0 0.0
    %870 = vmatprep.subr.mxu0 0.0
    %871 = vmatpush1.msra.mxu0 0.0
    %872 = vmatprep.subr.mxu0 0.0
    %873 = vmatpush1.msra.mxu0 0.0
    %874 = vmatprep.subr.mxu0 0.0
    %875 = vmatpush1.msra.mxu0 0.0
    %876 = vmatprep.subr.mxu0 0.0
    %877 = vmatpush1.msra.mxu0 0.0
    %878 = vmatprep.subr.mxu0 0.0
    %879 = vmatpush1.msra.mxu0 0.0
    %880 = vmatprep.subr.mxu0 0.0
    %881 = vmatpush1.msra.mxu0 0.0
    %882 = vmatprep.subr.mxu0 0.0
    %883 = vmatpush1.msra.mxu0 0.0
    %884 = vmatprep.subr.mxu0 0.0
    %885 = vmatpush1.msra.mxu0 0.0
    %886 = vmatprep.subr.mxu0 0.0
    %887 = vmatpush1.msra.mxu0 0.0
    %888 = vmatprep.subr.mxu0 0.0
    %889 = vmatpush1.msra.mxu0 0.0
    %890 = vmatprep.subr.mxu0 0.0
    %891 = vmatpush1.msra.mxu0 0.0
    %892 = vmatprep.subr.mxu0 0.0
    %893 = vmatpush1.msra.mxu0 0.0
    %894 = vmatprep.subr.mxu0 0.0
    %895 = vmatpush1.msra.mxu0 0.0
    %896 = vmatprep.subr.mxu0 0.0
    %897 = vmatpush1.msra.mxu0 0.0
    %898 = vmatprep.subr.mxu0 0.0
    %899 = vmatpush1.msra.mxu0 0.0
    %900 = vmatprep.subr.mxu0 0.0
    %901 = vmatpush1.msra.mxu0 0.0
    %902 = vmatprep.subr.mxu0 0.0
    %903 = vmatpush1.msra.mxu0 0.0
    %904 = vmatprep.subr.mxu0 0.0
    %905 = vmatpush1.msra.mxu0 0.0
    %906 = vmatprep.subr.mxu0 0.0
    %907 = vmatpush1.msra.mxu0 0.0
    %908 = vmatprep.subr.mxu0 0.0
    %909 = vmatpush1.msra.mxu0 0.0
    %910 = vmatprep.subr.mxu0 0.0
    %911 = vmatpush1.msra.mxu0 0.0
    %912 = vmatprep.subr.mxu0 0.0
    %913 = vmatpush1.msra.mxu0 0.0
    %914 = vmatprep.subr.mxu0 0.0
    %915 = vmatpush1.msra.mxu0 0.0
    %916 = vmatprep.subr.mxu0 0.0
    %917 = vmatpush1.msra.mxu0 0.0
    %918 = vmatprep.subr.mxu0 0.0
    %919 = vmatpush1.msra.mxu0 0.0
    %920 = vmatprep.subr.mxu0 0.0
    %921 = vmatpush1.msra.mxu0 0.0
    %922 = vmatprep.subr.mxu0 0.0
    %923 = vmatpush1.msra.mxu0 0.0
    %924 = vmatprep.subr.mxu0 0.0
    %925 = vmatpush1.msra.mxu0 0.0
    %926 = vmatprep.subr.mxu0 0.0
    %927 = vmatpush1.msra.mxu0 0.0
    %928 = vmatprep.mubr.f32.mxu0 0.0
    %929 = vmatmul.mubr.f32.gmra.mrb[0].mxu0 %v703
    %v930 = vpop.f32.mrb[0].mxu0
    %v931 = vadd.f32 0.0, %v930
    %v932 = vpop.f32.mrb[0].mxu0
    %v933 = vadd.f32 0.0, %v932
    %934 = vmatprep.mubr.f32.mxu0 0.0
    %935 = vmatmul.mubr.f32.gmra.mrb[0].mxu0 %v706
    %v936 = vpop.f32.mrb[0].mxu0
    %v937 = vadd.f32 0.0, %v936
    %v938 = vpop.f32.mrb[0].mxu0
    %v939 = vadd.f32 0.0, %v938
    %940 = vdwg.mxu0
    %941 = vmatprep.subr.mxu0 %v708
    %942 = vmatpush1.msra.mxu0 %v72
    %943 = vmatprep.subr.mxu0 0.0
    %944 = vmatpush1.msra.mxu0 0.0
    %945 = vmatprep.subr.mxu0 0.0
    %946 = vmatpush1.msra.mxu0 0.0
    %947 = vmatprep.subr.mxu0 0.0
    %948 = vmatpush1.msra.mxu0 0.0
    %949 = vmatprep.subr.mxu0 0.0
    %950 = vmatpush1.msra.mxu0 0.0
    %951 = vmatprep.subr.mxu0 0.0
    %952 = vmatpush1.msra.mxu0 0.0
    %953 = vmatprep.subr.mxu0 0.0
    %954 = vmatpush1.msra.mxu0 0.0
    %955 = vmatprep.subr.mxu0 0.0
    %956 = vmatpush1.msra.mxu0 0.0
    %957 = vmatprep.subr.mxu0 0.0
    %958 = vmatpush1.msra.mxu0 0.0
    %959 = vmatprep.subr.mxu0 0.0
    %960 = vmatpush1.msra.mxu0 0.0
    %961 = vmatprep.subr.mxu0 0.0
    %962 = vmatpush1.msra.mxu0 0.0
    %963 = vmatprep.subr.mxu0 0.0
    %964 = vmatpush1.msra.mxu0 0.0
    %965 = vmatprep.subr.mxu0 0.0
    %966 = vmatpush1.msra.mxu0 0.0
    %967 = vmatprep.subr.mxu0 0.0
    %968 = vmatpush1.msra.mxu0 0.0
    %969 = vmatprep.subr.mxu0 0.0
    %970 = vmatpush1.msra.mxu0 0.0
    %971 = vmatprep.subr.mxu0 0.0
    %972 = vmatpush1.msra.mxu0 0.0
    %973 = vmatprep.subr.mxu0 0.0
    %974 = vmatpush1.msra.mxu0 0.0
    %975 = vmatprep.subr.mxu0 0.0
    %976 = vmatpush1.msra.mxu0 0.0
    %977 = vmatprep.subr.mxu0 0.0
    %978 = vmatpush1.msra.mxu0 0.0
    %979 = vmatprep.subr.mxu0 0.0
    %980 = vmatpush1.msra.mxu0 0.0
    %981 = vmatprep.subr.mxu0 0.0
    %982 = vmatpush1.msra.mxu0 0.0
    %983 = vmatprep.subr.mxu0 0.0
    %984 = vmatpush1.msra.mxu0 0.0
    %985 = vmatprep.subr.mxu0 0.0
    %986 = vmatpush1.msra.mxu0 0.0
    %987 = vmatprep.subr.mxu0 0.0
    %988 = vmatpush1.msra.mxu0 0.0
    %989 = vmatprep.subr.mxu0 0.0
    %990 = vmatpush1.msra.mxu0 0.0
    %991 = vmatprep.subr.mxu0 0.0
    %992 = vmatpush1.msra.mxu0 0.0
    %993 = vmatprep.subr.mxu0 0.0
    %994 = vmatpush1.msra.mxu0 0.0
    %995 = vmatprep.subr.mxu0 0.0
    %996 = vmatpush1.msra.mxu0 0.0
    %997 = vmatprep.subr.mxu0 0.0
    %998 = vmatpush1.msra.mxu0 0.0
    %999 = vmatprep.subr.mxu0 0.0
    %1000 = vmatpush1.msra.mxu0 0.0
    %1001 = vmatprep.subr.mxu0 0.0
    %1002 = vmatpush1.msra.mxu0 0.0
    %1003 = vmatprep.subr.mxu0 0.0
    %1004 = vmatpush1.msra.mxu0 0.0
    %1005 = vmatprep.mubr.f32.mxu0 0.0
    %1006 = vmatmul.mubr.f32.gmra.mrb[0].mxu0 %v703
    %v1007 = vpop.f32.mrb[0].mxu0
    %v1008 = vadd.f32 0.0, %v1007
    %v1009 = vpop.f32.mrb[0].mxu0
    %v1010 = vadd.f32 0.0, %v1009
    %1011 = vmatprep.mubr.f32.mxu0 0.0
    %1012 = vmatmul.mubr.f32.gmra.mrb[0].mxu0 %v706
    %v1013 = vpop.f32.mrb[0].mxu0
    %v1014 = vadd.f32 0.0, %v1013
    %v1015 = vpop.f32.mrb[0].mxu0
    %v1016 = vadd.f32 0.0, %v1015
    %1017 = vdwg.mxu0
    %v1018 = vadd.f32 %v457, %v777
    %v1019 = vadd.f32 %v459, %v779
    %v1020 = vadd.f32 %v534, %v854
    %v1021 = vadd.f32 %v536, %v856
    %v1022 = vadd.f32 %v611, %v931
    %v1023 = vadd.f32 %v613, %v933
    %v1024 = vadd.f32 %v688, %v1008
    %v1025 = vadd.f32 %v690, %v1010
    %v1026 = vadd.f32 %v463, %v783
    %v1027 = vadd.f32 %v465, %v785
    %v1028 = vadd.f32 %v540, %v860
    %v1029 = vadd.f32 %v542, %v862
    %v1030 = vadd.f32 %v617, %v937
    %v1031 = vadd.f32 %v619, %v939
    %v1032 = vadd.f32 %v694, %v1014
    %v1033 = vadd.f32 %v696, %v1016
    %1035 = vset.pattern.permute.xlu0 0
    %1036 = vperm.xlu0 %1035, %v29
    %v1037 = vpop.permute.xlu0 %1036
    %1040 = vset.pattern.permute.xlu0 0
    %1041 = vperm.xlu0 %1040, %v30
    %v1042 = vpop.permute.xlu0 %1041
    %v1044 = vadd.f32 %v1018, %v1037
    %v1045 = vadd.f32 %v1019, %v1037
    %v1046 = vadd.f32 %v1020, %v1037
    %v1047 = vadd.f32 %v1021, %v1037
    %v1048 = vadd.f32 %v1022, %v1037
    %v1049 = vadd.f32 %v1023, %v1037
    %v1050 = vadd.f32 %v1024, %v1037
    %v1051 = vadd.f32 %v1025, %v1037
    %v1052 = vadd.f32 %v1026, %v1042
    %v1053 = vadd.f32 %v1027, %v1042
    %v1054 = vadd.f32 %v1028, %v1042
    %v1055 = vadd.f32 %v1029, %v1042
    %v1056 = vadd.f32 %v1030, %v1042
    %v1057 = vadd.f32 %v1031, %v1042
    %v1058 = vadd.f32 %v1032, %v1042
    %v1059 = vadd.f32 %v1033, %v1042
    %v1060 = vxor.u32 %v1052, 2147483648
    %v1061 = vxor.u32 %v1053, 2147483648
    %v1062 = vxor.u32 %v1054, 2147483648
    %v1063 = vxor.u32 %v1055, 2147483648
    %v1064 = vxor.u32 %v1056, 2147483648
    %v1065 = vxor.u32 %v1057, 2147483648
    %v1066 = vxor.u32 %v1058, 2147483648
    %v1067 = vxor.u32 %v1059, 2147483648
    %v1068 = vmul.f32 %v1060, 1.442695
    %v1069 = vpow.pop %v1068
    %v1070 = vmul.f32 %v1061, 1.442695
    %v1071 = vpow.pop %v1070
    %v1072 = vmul.f32 %v1062, 1.442695
    %v1073 = vpow.pop %v1072
    %v1074 = vmul.f32 %v1063, 1.442695
    %v1075 = vpow.pop %v1074
    %v1076 = vmul.f32 %v1064, 1.442695
    %v1077 = vpow.pop %v1076
    %v1078 = vmul.f32 %v1065, 1.442695
    %v1079 = vpow.pop %v1078
    %v1080 = vmul.f32 %v1066, 1.442695
    %v1081 = vpow.pop %v1080
    %v1082 = vmul.f32 %v1067, 1.442695
    %v1083 = vpow.pop %v1082
    %v1084 = vadd.f32 %v1069, 1.0
    %v1085 = vadd.f32 %v1071, 1.0
    %v1086 = vadd.f32 %v1073, 1.0
    %v1087 = vadd.f32 %v1075, 1.0
    %v1088 = vadd.f32 %v1077, 1.0
    %v1089 = vadd.f32 %v1079, 1.0
    %v1090 = vadd.f32 %v1081, 1.0
    %v1091 = vadd.f32 %v1083, 1.0
    %v1092 = vrcp.pop %v1084
    %v1093 = vmul.f32 1.0, %v1092
    %v1094 = vrcp.pop %v1085
    %v1095 = vmul.f32 1.0, %v1094
    %v1096 = vrcp.pop %v1086
    %v1097 = vmul.f32 1.0, %v1096
    %v1098 = vrcp.pop %v1087
    %v1099 = vmul.f32 1.0, %v1098
    %v1100 = vrcp.pop %v1088
    %v1101 = vmul.f32 1.0, %v1100
    %v1102 = vrcp.pop %v1089
    %v1103 = vmul.f32 1.0, %v1102
    %v1104 = vrcp.pop %v1090
    %v1105 = vmul.f32 1.0, %v1104
    %v1106 = vrcp.pop %v1091
    %v1107 = vmul.f32 1.0, %v1106
    %v1108 = vmul.f32 %v1044, %v1093
    %v1109 = vmul.f32 %v1045, %v1095
    %v1110 = vmul.f32 %v1046, %v1097
    %v1111 = vmul.f32 %v1047, %v1099
    %v1112 = vmul.f32 %v1048, %v1101
    %v1113 = vmul.f32 %v1049, %v1103
    %v1114 = vmul.f32 %v1050, %v1105
    %v1115 = vmul.f32 %v1051, %v1107
    %1116 = vst [vmem:[#allocation5] sm:$0xff] %v1108
    %1117 = vst [vmem:[#allocation5 + $0x8] sm:$0xff] %v1109
    %1118 = vst [vmem:[#allocation5 + $0x10] sm:$0xff] %v1110
    %1119 = vst [vmem:[#allocation5 + $0x18] sm:$0xff] %v1111
    %1120 = vst [vmem:[#allocation5 + $0x20] sm:$0xff] %v1112
    %1121 = vst [vmem:[#allocation5 + $0x28] sm:$0xff] %v1113
    %1122 = vst [vmem:[#allocation5 + $0x30] sm:$0xff] %v1114
    %1123 = vst [vmem:[#allocation5 + $0x38] sm:$0xff] %v1115
    %s1124 = scalar_lea.vmem [#allocation2], 40
    %v1125 = vld [vmem:[%s1124] sm:$0xff]
    %v1126 = vld [vmem:[%s1124 + $0x8] sm:$0xff]
    %v1127 = vld [vmem:[%s1124 + $0x10] sm:$0xff]
    %v1128 = vld [vmem:[%s1124 + $0x18] sm:$0xff]
    %v1129 = vld [vmem:[%s1124 + $0x20] sm:$0xff]
    %v1130 = vld [vmem:[%s1] sm:$0xff]
    %v1131 = vld [vmem:[%s1 + $0x8] sm:$0xff]
    %v1132 = vld [vmem:[%s38] sm:$0xff]
    %v1133 = vld [vmem:[%s38 + $0x8] sm:$0xff]
    %v1139 = vcombine.high %v1125, %v1125
    %v1140 = vcombine.high %v1126, %v1126
    %v1141 = vcombine.high %v1127, %v1127
    %v1142 = vcombine.high %v1128, %v1128
    %v1144 = vsel %vm50, %v1132, 0
    %v1147 = vsel %vm50, %v1133, 0
    %v1149 = vsel %vm57, %v1139, 0
    %v1151 = vsel %vm57, %v1126, 0
    %v1153 = vsel %vm57, %v1140, 0
    %v1155 = vsel %vm57, %v1127, 0
    %v1157 = vsel %vm57, %v1141, 0
    %v1159 = vsel %vm57, %v1128, 0
    %v1161 = vsel %vm57, %v1142, 0
    %v1163 = vsel %vm57, %v1129, 0
    %1165 = vmatprep.subr.mxu0 %v1151
    %1166 = vmatpush1.msra.mxu0 %v1149
    %1167 = vmatprep.subr.mxu0 0.0
    %1168 = vmatpush1.msra.mxu0 0.0
    %1169 = vmatprep.subr.mxu0 0.0
    %1170 = vmatpush1.msra.mxu0 0.0
    %1171 = vmatprep.subr.mxu0 0.0
    %1172 = vmatpush1.msra.mxu0 0.0
    %1173 = vmatprep.subr.mxu0 0.0
    %1174 = vmatpush1.msra.mxu0 0.0
    %1175 = vmatprep.subr.mxu0 0.0
    %1176 = vmatpush1.msra.mxu0 0.0
    %1177 = vmatprep.subr.mxu0 0.0
    %1178 = vmatpush1.msra.mxu0 0.0
    %1179 = vmatprep.subr.mxu0 0.0
    %1180 = vmatpush1.msra.mxu0 0.0
    %1181 = vmatprep.subr.mxu0 0.0
    %1182 = vmatpush1.msra.mxu0 0.0
    %1183 = vmatprep.subr.mxu0 0.0
    %1184 = vmatpush1.msra.mxu0 0.0
    %1185 = vmatprep.subr.mxu0 0.0
    %1186 = vmatpush1.msra.mxu0 0.0
    %1187 = vmatprep.subr.mxu0 0.0
    %1188 = vmatpush1.msra.mxu0 0.0
    %1189 = vmatprep.subr.mxu0 0.0
    %1190 = vmatpush1.msra.mxu0 0.0
    %1191 = vmatprep.subr.mxu0 0.0
    %1192 = vmatpush1.msra.mxu0 0.0
    %1193 = vmatprep.subr.mxu0 0.0
    %1194 = vmatpush1.msra.mxu0 0.0
    %1195 = vmatprep.subr.mxu0 0.0
    %1196 = vmatpush1.msra.mxu0 0.0
    %1197 = vmatprep.subr.mxu0 0.0
    %1198 = vmatpush1.msra.mxu0 0.0
    %1199 = vmatprep.subr.mxu0 0.0
    %1200 = vmatpush1.msra.mxu0 0.0
    %1201 = vmatprep.subr.mxu0 0.0
    %1202 = vmatpush1.msra.mxu0 0.0
    %1203 = vmatprep.subr.mxu0 0.0
    %1204 = vmatpush1.msra.mxu0 0.0
    %1205 = vmatprep.subr.mxu0 0.0
    %1206 = vmatpush1.msra.mxu0 0.0
    %1207 = vmatprep.subr.mxu0 0.0
    %1208 = vmatpush1.msra.mxu0 0.0
    %1209 = vmatprep.subr.mxu0 0.0
    %1210 = vmatpush1.msra.mxu0 0.0
    %1211 = vmatprep.subr.mxu0 0.0
    %1212 = vmatpush1.msra.mxu0 0.0
    %1213 = vmatprep.subr.mxu0 0.0
    %1214 = vmatpush1.msra.mxu0 0.0
    %1215 = vmatprep.subr.mxu0 0.0
    %1216 = vmatpush1.msra.mxu0 0.0
    %1217 = vmatprep.subr.mxu0 0.0
    %1218 = vmatpush1.msra.mxu0 0.0
    %1219 = vmatprep.subr.mxu0 0.0
    %1220 = vmatpush1.msra.mxu0 0.0
    %1221 = vmatprep.subr.mxu0 0.0
    %1222 = vmatpush1.msra.mxu0 0.0
    %1223 = vmatprep.subr.mxu0 0.0
    %1224 = vmatpush1.msra.mxu0 0.0
    %1225 = vmatprep.subr.mxu0 0.0
    %1226 = vmatpush1.msra.mxu0 0.0
    %1227 = vmatprep.subr.mxu0 0.0
    %1228 = vmatpush1.msra.mxu0 0.0
    %1229 = vmatprep.mubr.f32.mxu0 0.0
    %1230 = vmatmul.mubr.f32.gmra.mrb[0].mxu0 %v1144
    %v1231 = vpop.f32.mrb[0].mxu0
    %v1232 = vadd.f32 0.0, %v1231
    %v1233 = vpop.f32.mrb[0].mxu0
    %v1234 = vadd.f32 0.0, %v1233
    %1235 = vmatprep.mubr.f32.mxu0 0.0
    %1236 = vmatmul.mubr.f32.gmra.mrb[0].mxu0 %v1147
    %v1237 = vpop.f32.mrb[0].mxu0
    %v1238 = vadd.f32 0.0, %v1237
    %v1239 = vpop.f32.mrb[0].mxu0
    %v1240 = vadd.f32 0.0, %v1239
    %1241 = vdwg.mxu0
    %1242 = vmatprep.subr.mxu0 %v1155
    %1243 = vmatpush1.msra.mxu0 %v1153
    %1244 = vmatprep.subr.mxu0 0.0
    %1245 = vmatpush1.msra.mxu0 0.0
    %1246 = vmatprep.subr.mxu0 0.0
    %1247 = vmatpush1.msra.mxu0 0.0
    %1248 = vmatprep.subr.mxu0 0.0
    %1249 = vmatpush1.msra.mxu0 0.0
    %1250 = vmatprep.subr.mxu0 0.0
    %1251 = vmatpush1.msra.mxu0 0.0
    %1252 = vmatprep.subr.mxu0 0.0
    %1253 = vmatpush1.msra.mxu0 0.0
    %1254 = vmatprep.subr.mxu0 0.0
    %1255 = vmatpush1.msra.mxu0 0.0
    %1256 = vmatprep.subr.mxu0 0.0
    %1257 = vmatpush1.msra.mxu0 0.0
    %1258 = vmatprep.subr.mxu0 0.0
    %1259 = vmatpush1.msra.mxu0 0.0
    %1260 = vmatprep.subr.mxu0 0.0
    %1261 = vmatpush1.msra.mxu0 0.0
    %1262 = vmatprep.subr.mxu0 0.0
    %1263 = vmatpush1.msra.mxu0 0.0
    %1264 = vmatprep.subr.mxu0 0.0
    %1265 = vmatpush1.msra.mxu0 0.0
    %1266 = vmatprep.subr.mxu0 0.0
    %1267 = vmatpush1.msra.mxu0 0.0
    %1268 = vmatprep.subr.mxu0 0.0
    %1269 = vmatpush1.msra.mxu0 0.0
    %1270 = vmatprep.subr.mxu0 0.0
    %1271 = vmatpush1.msra.mxu0 0.0
    %1272 = vmatprep.subr.mxu0 0.0
    %1273 = vmatpush1.msra.mxu0 0.0
    %1274 = vmatprep.subr.mxu0 0.0
    %1275 = vmatpush1.msra.mxu0 0.0
    %1276 = vmatprep.subr.mxu0 0.0
    %1277 = vmatpush1.msra.mxu0 0.0
    %1278 = vmatprep.subr.mxu0 0.0
    %1279 = vmatpush1.msra.mxu0 0.0
    %1280 = vmatprep.subr.mxu0 0.0
    %1281 = vmatpush1.msra.mxu0 0.0
    %1282 = vmatprep.subr.mxu0 0.0
    %1283 = vmatpush1.msra.mxu0 0.0
    %1284 = vmatprep.subr.mxu0 0.0
    %1285 = vmatpush1.msra.mxu0 0.0
    %1286 = vmatprep.subr.mxu0 0.0
    %1287 = vmatpush1.msra.mxu0 0.0
    %1288 = vmatprep.subr.mxu0 0.0
    %1289 = vmatpush1.msra.mxu0 0.0
    %1290 = vmatprep.subr.mxu0 0.0
    %1291 = vmatpush1.msra.mxu0 0.0
    %1292 = vmatprep.subr.mxu0 0.0
    %1293 = vmatpush1.msra.mxu0 0.0
    %1294 = vmatprep.subr.mxu0 0.0
    %1295 = vmatpush1.msra.mxu0 0.0
    %1296 = vmatprep.subr.mxu0 0.0
    %1297 = vmatpush1.msra.mxu0 0.0
    %1298 = vmatprep.subr.mxu0 0.0
    %1299 = vmatpush1.msra.mxu0 0.0
    %1300 = vmatprep.subr.mxu0 0.0
    %1301 = vmatpush1.msra.mxu0 0.0
    %1302 = vmatprep.subr.mxu0 0.0
    %1303 = vmatpush1.msra.mxu0 0.0
    %1304 = vmatprep.subr.mxu0 0.0
    %1305 = vmatpush1.msra.mxu0 0.0
    %1306 = vmatprep.mubr.f32.mxu0 0.0
    %1307 = vmatmul.mubr.f32.gmra.mrb[0].mxu0 %v1144
    %v1308 = vpop.f32.mrb[0].mxu0
    %v1309 = vadd.f32 0.0, %v1308
    %v1310 = vpop.f32.mrb[0].mxu0
    %v1311 = vadd.f32 0.0, %v1310
    %1312 = vmatprep.mubr.f32.mxu0 0.0
    %1313 = vmatmul.mubr.f32.gmra.mrb[0].mxu0 %v1147
    %v1314 = vpop.f32.mrb[0].mxu0
    %v1315 = vadd.f32 0.0, %v1314
    %v1316 = vpop.f32.mrb[0].mxu0
    %v1317 = vadd.f32 0.0, %v1316
    %1318 = vdwg.mxu0
    %1319 = vmatprep.subr.mxu0 %v1159
    %1320 = vmatpush1.msra.mxu0 %v1157
    %1321 = vmatprep.subr.mxu0 0.0
    %1322 = vmatpush1.msra.mxu0 0.0
    %1323 = vmatprep.subr.mxu0 0.0
    %1324 = vmatpush1.msra.mxu0 0.0
    %1325 = vmatprep.subr.mxu0 0.0
    %1326 = vmatpush1.msra.mxu0 0.0
    %1327 = vmatprep.subr.mxu0 0.0
    %1328 = vmatpush1.msra.mxu0 0.0
    %1329 = vmatprep.subr.mxu0 0.0
    %1330 = vmatpush1.msra.mxu0 0.0
    %1331 = vmatprep.subr.mxu0 0.0
    %1332 = vmatpush1.msra.mxu0 0.0
    %1333 = vmatprep.subr.mxu0 0.0
    %1334 = vmatpush1.msra.mxu0 0.0
    %1335 = vmatprep.subr.mxu0 0.0
    %1336 = vmatpush1.msra.mxu0 0.0
    %1337 = vmatprep.subr.mxu0 0.0
    %1338 = vmatpush1.msra.mxu0 0.0
    %1339 = vmatprep.subr.mxu0 0.0
    %1340 = vmatpush1.msra.mxu0 0.0
    %1341 = vmatprep.subr.mxu0 0.0
    %1342 = vmatpush1.msra.mxu0 0.0
    %1343 = vmatprep.subr.mxu0 0.0
    %1344 = vmatpush1.msra.mxu0 0.0
    %1345 = vmatprep.subr.mxu0 0.0
    %1346 = vmatpush1.msra.mxu0 0.0
    %1347 = vmatprep.subr.mxu0 0.0
    %1348 = vmatpush1.msra.mxu0 0.0
    %1349 = vmatprep.subr.mxu0 0.0
    %1350 = vmatpush1.msra.mxu0 0.0
    %1351 = vmatprep.subr.mxu0 0.0
    %1352 = vmatpush1.msra.mxu0 0.0
    %1353 = vmatprep.subr.mxu0 0.0
    %1354 = vmatpush1.msra.mxu0 0.0
    %1355 = vmatprep.subr.mxu0 0.0
    %1356 = vmatpush1.msra.mxu0 0.0
    %1357 = vmatprep.subr.mxu0 0.0
    %1358 = vmatpush1.msra.mxu0 0.0
    %1359 = vmatprep.subr.mxu0 0.0
    %1360 = vmatpush1.msra.mxu0 0.0
    %1361 = vmatprep.subr.mxu0 0.0
    %1362 = vmatpush1.msra.mxu0 0.0
    %1363 = vmatprep.subr.mxu0 0.0
    %1364 = vmatpush1.msra.mxu0 0.0
    %1365 = vmatprep.subr.mxu0 0.0
    %1366 = vmatpush1.msra.mxu0 0.0
    %1367 = vmatprep.subr.mxu0 0.0
    %1368 = vmatpush1.msra.mxu0 0.0
    %1369 = vmatprep.subr.mxu0 0.0
    %1370 = vmatpush1.msra.mxu0 0.0
    %1371 = vmatprep.subr.mxu0 0.0
    %1372 = vmatpush1.msra.mxu0 0.0
    %1373 = vmatprep.subr.mxu0 0.0
    %1374 = vmatpush1.msra.mxu0 0.0
    %1375 = vmatprep.subr.mxu0 0.0
    %1376 = vmatpush1.msra.mxu0 0.0
    %1377 = vmatprep.subr.mxu0 0.0
    %1378 = vmatpush1.msra.mxu0 0.0
    %1379 = vmatprep.subr.mxu0 0.0
    %1380 = vmatpush1.msra.mxu0 0.0
    %1381 = vmatprep.subr.mxu0 0.0
    %1382 = vmatpush1.msra.mxu0 0.0
    %1383 = vmatprep.mubr.f32.mxu0 0.0
    %1384 = vmatmul.mubr.f32.gmra.mrb[0].mxu0 %v1144
    %v1385 = vpop.f32.mrb[0].mxu0
    %v1386 = vadd.f32 0.0, %v1385
    %v1387 = vpop.f32.mrb[0].mxu0
    %v1388 = vadd.f32 0.0, %v1387
    %1389 = vmatprep.mubr.f32.mxu0 0.0
    %1390 = vmatmul.mubr.f32.gmra.mrb[0].mxu0 %v1147
    %v1391 = vpop.f32.mrb[0].mxu0
    %v1392 = vadd.f32 0.0, %v1391
    %v1393 = vpop.f32.mrb[0].mxu0
    %v1394 = vadd.f32 0.0, %v1393
    %1395 = vdwg.mxu0
    %1396 = vmatprep.subr.mxu0 %v1163
    %1397 = vmatpush1.msra.mxu0 %v1161
    %1398 = vmatprep.subr.mxu0 0.0
    %1399 = vmatpush1.msra.mxu0 0.0
    %1400 = vmatprep.subr.mxu0 0.0
    %1401 = vmatpush1.msra.mxu0 0.0
    %1402 = vmatprep.subr.mxu0 0.0
    %1403 = vmatpush1.msra.mxu0 0.0
    %1404 = vmatprep.subr.mxu0 0.0
    %1405 = vmatpush1.msra.mxu0 0.0
    %1406 = vmatprep.subr.mxu0 0.0
    %1407 = vmatpush1.msra.mxu0 0.0
    %1408 = vmatprep.subr.mxu0 0.0
    %1409 = vmatpush1.msra.mxu0 0.0
    %1410 = vmatprep.subr.mxu0 0.0
    %1411 = vmatpush1.msra.mxu0 0.0
    %1412 = vmatprep.subr.mxu0 0.0
    %1413 = vmatpush1.msra.mxu0 0.0
    %1414 = vmatprep.subr.mxu0 0.0
    %1415 = vmatpush1.msra.mxu0 0.0
    %1416 = vmatprep.subr.mxu0 0.0
    %1417 = vmatpush1.msra.mxu0 0.0
    %1418 = vmatprep.subr.mxu0 0.0
    %1419 = vmatpush1.msra.mxu0 0.0
    %1420 = vmatprep.subr.mxu0 0.0
    %1421 = vmatpush1.msra.mxu0 0.0
    %1422 = vmatprep.subr.mxu0 0.0
    %1423 = vmatpush1.msra.mxu0 0.0
    %1424 = vmatprep.subr.mxu0 0.0
    %1425 = vmatpush1.msra.mxu0 0.0
    %1426 = vmatprep.subr.mxu0 0.0
    %1427 = vmatpush1.msra.mxu0 0.0
    %1428 = vmatprep.subr.mxu0 0.0
    %1429 = vmatpush1.msra.mxu0 0.0
    %1430 = vmatprep.subr.mxu0 0.0
    %1431 = vmatpush1.msra.mxu0 0.0
    %1432 = vmatprep.subr.mxu0 0.0
    %1433 = vmatpush1.msra.mxu0 0.0
    %1434 = vmatprep.subr.mxu0 0.0
    %1435 = vmatpush1.msra.mxu0 0.0
    %1436 = vmatprep.subr.mxu0 0.0
    %1437 = vmatpush1.msra.mxu0 0.0
    %1438 = vmatprep.subr.mxu0 0.0
    %1439 = vmatpush1.msra.mxu0 0.0
    %1440 = vmatprep.subr.mxu0 0.0
    %1441 = vmatpush1.msra.mxu0 0.0
    %1442 = vmatprep.subr.mxu0 0.0
    %1443 = vmatpush1.msra.mxu0 0.0
    %1444 = vmatprep.subr.mxu0 0.0
    %1445 = vmatpush1.msra.mxu0 0.0
    %1446 = vmatprep.subr.mxu0 0.0
    %1447 = vmatpush1.msra.mxu0 0.0
    %1448 = vmatprep.subr.mxu0 0.0
    %1449 = vmatpush1.msra.mxu0 0.0
    %1450 = vmatprep.subr.mxu0 0.0
    %1451 = vmatpush1.msra.mxu0 0.0
    %1452 = vmatprep.subr.mxu0 0.0
    %1453 = vmatpush1.msra.mxu0 0.0
    %1454 = vmatprep.subr.mxu0 0.0
    %1455 = vmatpush1.msra.mxu0 0.0
    %1456 = vmatprep.subr.mxu0 0.0
    %1457 = vmatpush1.msra.mxu0 0.0
    %1458 = vmatprep.subr.mxu0 0.0
    %1459 = vmatpush1.msra.mxu0 0.0
    %1460 = vmatprep.mubr.f32.mxu0 0.0
    %1461 = vmatmul.mubr.f32.gmra.mrb[0].mxu0 %v1144
    %v1462 = vpop.f32.mrb[0].mxu0
    %v1463 = vadd.f32 0.0, %v1462
    %v1464 = vpop.f32.mrb[0].mxu0
    %v1465 = vadd.f32 0.0, %v1464
    %1466 = vmatprep.mubr.f32.mxu0 0.0
    %1467 = vmatmul.mubr.f32.gmra.mrb[0].mxu0 %v1147
    %v1468 = vpop.f32.mrb[0].mxu0
    %v1469 = vadd.f32 0.0, %v1468
    %v1470 = vpop.f32.mrb[0].mxu0
    %v1471 = vadd.f32 0.0, %v1470
    %1472 = vdwg.mxu0
    %v1474 = vsel %vm50, %v1130, 0
    %v1477 = vsel %vm50, %v1131, 0
    %v1479 = vsel %vm57, %v1125, 0
    %1481 = vmatprep.subr.mxu0 %v1149
    %1482 = vmatpush1.msra.mxu0 %v1479
    %1483 = vmatprep.subr.mxu0 0.0
    %1484 = vmatpush1.msra.mxu0 0.0
    %1485 = vmatprep.subr.mxu0 0.0
    %1486 = vmatpush1.msra.mxu0 0.0
    %1487 = vmatprep.subr.mxu0 0.0
    %1488 = vmatpush1.msra.mxu0 0.0
    %1489 = vmatprep.subr.mxu0 0.0
    %1490 = vmatpush1.msra.mxu0 0.0
    %1491 = vmatprep.subr.mxu0 0.0
    %1492 = vmatpush1.msra.mxu0 0.0
    %1493 = vmatprep.subr.mxu0 0.0
    %1494 = vmatpush1.msra.mxu0 0.0
    %1495 = vmatprep.subr.mxu0 0.0
    %1496 = vmatpush1.msra.mxu0 0.0
    %1497 = vmatprep.subr.mxu0 0.0
    %1498 = vmatpush1.msra.mxu0 0.0
    %1499 = vmatprep.subr.mxu0 0.0
    %1500 = vmatpush1.msra.mxu0 0.0
    %1501 = vmatprep.subr.mxu0 0.0
    %1502 = vmatpush1.msra.mxu0 0.0
    %1503 = vmatprep.subr.mxu0 0.0
    %1504 = vmatpush1.msra.mxu0 0.0
    %1505 = vmatprep.subr.mxu0 0.0
    %1506 = vmatpush1.msra.mxu0 0.0
    %1507 = vmatprep.subr.mxu0 0.0
    %1508 = vmatpush1.msra.mxu0 0.0
    %1509 = vmatprep.subr.mxu0 0.0
    %1510 = vmatpush1.msra.mxu0 0.0
    %1511 = vmatprep.subr.mxu0 0.0
    %1512 = vmatpush1.msra.mxu0 0.0
    %1513 = vmatprep.subr.mxu0 0.0
    %1514 = vmatpush1.msra.mxu0 0.0
    %1515 = vmatprep.subr.mxu0 0.0
    %1516 = vmatpush1.msra.mxu0 0.0
    %1517 = vmatprep.subr.mxu0 0.0
    %1518 = vmatpush1.msra.mxu0 0.0
    %1519 = vmatprep.subr.mxu0 0.0
    %1520 = vmatpush1.msra.mxu0 0.0
    %1521 = vmatprep.subr.mxu0 0.0
    %1522 = vmatpush1.msra.mxu0 0.0
    %1523 = vmatprep.subr.mxu0 0.0
    %1524 = vmatpush1.msra.mxu0 0.0
    %1525 = vmatprep.subr.mxu0 0.0
    %1526 = vmatpush1.msra.mxu0 0.0
    %1527 = vmatprep.subr.mxu0 0.0
    %1528 = vmatpush1.msra.mxu0 0.0
    %1529 = vmatprep.subr.mxu0 0.0
    %1530 = vmatpush1.msra.mxu0 0.0
    %1531 = vmatprep.subr.mxu0 0.0
    %1532 = vmatpush1.msra.mxu0 0.0
    %1533 = vmatprep.subr.mxu0 0.0
    %1534 = vmatpush1.msra.mxu0 0.0
    %1535 = vmatprep.subr.mxu0 0.0
    %1536 = vmatpush1.msra.mxu0 0.0
    %1537 = vmatprep.subr.mxu0 0.0
    %1538 = vmatpush1.msra.mxu0 0.0
    %1539 = vmatprep.subr.mxu0 0.0
    %1540 = vmatpush1.msra.mxu0 0.0
    %1541 = vmatprep.subr.mxu0 0.0
    %1542 = vmatpush1.msra.mxu0 0.0
    %1543 = vmatprep.subr.mxu0 0.0
    %1544 = vmatpush1.msra.mxu0 0.0
    %1545 = vmatprep.mubr.f32.mxu0 0.0
    %1546 = vmatmul.mubr.f32.gmra.mrb[0].mxu0 %v1474
    %v1547 = vpop.f32.mrb[0].mxu0
    %v1548 = vadd.f32 %v1232, %v1547
    %v1549 = vpop.f32.mrb[0].mxu0
    %v1550 = vadd.f32 %v1234, %v1549
    %1551 = vmatprep.mubr.f32.mxu0 0.0
    %1552 = vmatmul.mubr.f32.gmra.mrb[0].mxu0 %v1477
    %v1553 = vpop.f32.mrb[0].mxu0
    %v1554 = vadd.f32 %v1238, %v1553
    %v1555 = vpop.f32.mrb[0].mxu0
    %v1556 = vadd.f32 %v1240, %v1555
    %1557 = vdwg.mxu0
    %1558 = vmatprep.subr.mxu0 %v1153
    %1559 = vmatpush1.msra.mxu0 %v1151
    %1560 = vmatprep.subr.mxu0 0.0
    %1561 = vmatpush1.msra.mxu0 0.0
    %1562 = vmatprep.subr.mxu0 0.0
    %1563 = vmatpush1.msra.mxu0 0.0
    %1564 = vmatprep.subr.mxu0 0.0
    %1565 = vmatpush1.msra.mxu0 0.0
    %1566 = vmatprep.subr.mxu0 0.0
    %1567 = vmatpush1.msra.mxu0 0.0
    %1568 = vmatprep.subr.mxu0 0.0
    %1569 = vmatpush1.msra.mxu0 0.0
    %1570 = vmatprep.subr.mxu0 0.0
    %1571 = vmatpush1.msra.mxu0 0.0
    %1572 = vmatprep.subr.mxu0 0.0
    %1573 = vmatpush1.msra.mxu0 0.0
    %1574 = vmatprep.subr.mxu0 0.0
    %1575 = vmatpush1.msra.mxu0 0.0
    %1576 = vmatprep.subr.mxu0 0.0
    %1577 = vmatpush1.msra.mxu0 0.0
    %1578 = vmatprep.subr.mxu0 0.0
    %1579 = vmatpush1.msra.mxu0 0.0
    %1580 = vmatprep.subr.mxu0 0.0
    %1581 = vmatpush1.msra.mxu0 0.0
    %1582 = vmatprep.subr.mxu0 0.0
    %1583 = vmatpush1.msra.mxu0 0.0
    %1584 = vmatprep.subr.mxu0 0.0
    %1585 = vmatpush1.msra.mxu0 0.0
    %1586 = vmatprep.subr.mxu0 0.0
    %1587 = vmatpush1.msra.mxu0 0.0
    %1588 = vmatprep.subr.mxu0 0.0
    %1589 = vmatpush1.msra.mxu0 0.0
    %1590 = vmatprep.subr.mxu0 0.0
    %1591 = vmatpush1.msra.mxu0 0.0
    %1592 = vmatprep.subr.mxu0 0.0
    %1593 = vmatpush1.msra.mxu0 0.0
    %1594 = vmatprep.subr.mxu0 0.0
    %1595 = vmatpush1.msra.mxu0 0.0
    %1596 = vmatprep.subr.mxu0 0.0
    %1597 = vmatpush1.msra.mxu0 0.0
    %1598 = vmatprep.subr.mxu0 0.0
    %1599 = vmatpush1.msra.mxu0 0.0
    %1600 = vmatprep.subr.mxu0 0.0
    %1601 = vmatpush1.msra.mxu0 0.0
    %1602 = vmatprep.subr.mxu0 0.0
    %1603 = vmatpush1.msra.mxu0 0.0
    %1604 = vmatprep.subr.mxu0 0.0
    %1605 = vmatpush1.msra.mxu0 0.0
    %1606 = vmatprep.subr.mxu0 0.0
    %1607 = vmatpush1.msra.mxu0 0.0
    %1608 = vmatprep.subr.mxu0 0.0
    %1609 = vmatpush1.msra.mxu0 0.0
    %1610 = vmatprep.subr.mxu0 0.0
    %1611 = vmatpush1.msra.mxu0 0.0
    %1612 = vmatprep.subr.mxu0 0.0
    %1613 = vmatpush1.msra.mxu0 0.0
    %1614 = vmatprep.subr.mxu0 0.0
    %1615 = vmatpush1.msra.mxu0 0.0
    %1616 = vmatprep.subr.mxu0 0.0
    %1617 = vmatpush1.msra.mxu0 0.0
    %1618 = vmatprep.subr.mxu0 0.0
    %1619 = vmatpush1.msra.mxu0 0.0
    %1620 = vmatprep.subr.mxu0 0.0
    %1621 = vmatpush1.msra.mxu0 0.0
    %1622 = vmatprep.mubr.f32.mxu0 0.0
    %1623 = vmatmul.mubr.f32.gmra.mrb[0].mxu0 %v1474
    %v1624 = vpop.f32.mrb[0].mxu0
    %v1625 = vadd.f32 %v1309, %v1624
    %v1626 = vpop.f32.mrb[0].mxu0
    %v1627 = vadd.f32 %v1311, %v1626
    %1628 = vmatprep.mubr.f32.mxu0 0.0
    %1629 = vmatmul.mubr.f32.gmra.mrb[0].mxu0 %v1477
    %v1630 = vpop.f32.mrb[0].mxu0
    %v1631 = vadd.f32 %v1315, %v1630
    %v1632 = vpop.f32.mrb[0].mxu0
    %v1633 = vadd.f32 %v1317, %v1632
    %1634 = vdwg.mxu0
    %1635 = vmatprep.subr.mxu0 %v1157
    %1636 = vmatpush1.msra.mxu0 %v1155
    %1637 = vmatprep.subr.mxu0 0.0
    %1638 = vmatpush1.msra.mxu0 0.0
    %1639 = vmatprep.subr.mxu0 0.0
    %1640 = vmatpush1.msra.mxu0 0.0
    %1641 = vmatprep.subr.mxu0 0.0
    %1642 = vmatpush1.msra.mxu0 0.0
    %1643 = vmatprep.subr.mxu0 0.0
    %1644 = vmatpush1.msra.mxu0 0.0
    %1645 = vmatprep.subr.mxu0 0.0
    %1646 = vmatpush1.msra.mxu0 0.0
    %1647 = vmatprep.subr.mxu0 0.0
    %1648 = vmatpush1.msra.mxu0 0.0
    %1649 = vmatprep.subr.mxu0 0.0
    %1650 = vmatpush1.msra.mxu0 0.0
    %1651 = vmatprep.subr.mxu0 0.0
    %1652 = vmatpush1.msra.mxu0 0.0
    %1653 = vmatprep.subr.mxu0 0.0
    %1654 = vmatpush1.msra.mxu0 0.0
    %1655 = vmatprep.subr.mxu0 0.0
    %1656 = vmatpush1.msra.mxu0 0.0
    %1657 = vmatprep.subr.mxu0 0.0
    %1658 = vmatpush1.msra.mxu0 0.0
    %1659 = vmatprep.subr.mxu0 0.0
    %1660 = vmatpush1.msra.mxu0 0.0
    %1661 = vmatprep.subr.mxu0 0.0
    %1662 = vmatpush1.msra.mxu0 0.0
    %1663 = vmatprep.subr.mxu0 0.0
    %1664 = vmatpush1.msra.mxu0 0.0
    %1665 = vmatprep.subr.mxu0 0.0
    %1666 = vmatpush1.msra.mxu0 0.0
    %1667 = vmatprep.subr.mxu0 0.0
    %1668 = vmatpush1.msra.mxu0 0.0
    %1669 = vmatprep.subr.mxu0 0.0
    %1670 = vmatpush1.msra.mxu0 0.0
    %1671 = vmatprep.subr.mxu0 0.0
    %1672 = vmatpush1.msra.mxu0 0.0
    %1673 = vmatprep.subr.mxu0 0.0
    %1674 = vmatpush1.msra.mxu0 0.0
    %1675 = vmatprep.subr.mxu0 0.0
    %1676 = vmatpush1.msra.mxu0 0.0
    %1677 = vmatprep.subr.mxu0 0.0
    %1678 = vmatpush1.msra.mxu0 0.0
    %1679 = vmatprep.subr.mxu0 0.0
    %1680 = vmatpush1.msra.mxu0 0.0
    %1681 = vmatprep.subr.mxu0 0.0
    %1682 = vmatpush1.msra.mxu0 0.0
    %1683 = vmatprep.subr.mxu0 0.0
    %1684 = vmatpush1.msra.mxu0 0.0
    %1685 = vmatprep.subr.mxu0 0.0
    %1686 = vmatpush1.msra.mxu0 0.0
    %1687 = vmatprep.subr.mxu0 0.0
    %1688 = vmatpush1.msra.mxu0 0.0
    %1689 = vmatprep.subr.mxu0 0.0
    %1690 = vmatpush1.msra.mxu0 0.0
    %1691 = vmatprep.subr.mxu0 0.0
    %1692 = vmatpush1.msra.mxu0 0.0
    %1693 = vmatprep.subr.mxu0 0.0
    %1694 = vmatpush1.msra.mxu0 0.0
    %1695 = vmatprep.subr.mxu0 0.0
    %1696 = vmatpush1.msra.mxu0 0.0
    %1697 = vmatprep.subr.mxu0 0.0
    %1698 = vmatpush1.msra.mxu0 0.0
    %1699 = vmatprep.mubr.f32.mxu0 0.0
    %1700 = vmatmul.mubr.f32.gmra.mrb[0].mxu0 %v1474
    %v1701 = vpop.f32.mrb[0].mxu0
    %v1702 = vadd.f32 %v1386, %v1701
    %v1703 = vpop.f32.mrb[0].mxu0
    %v1704 = vadd.f32 %v1388, %v1703
    %1705 = vmatprep.mubr.f32.mxu0 0.0
    %1706 = vmatmul.mubr.f32.gmra.mrb[0].mxu0 %v1477
    %v1707 = vpop.f32.mrb[0].mxu0
    %v1708 = vadd.f32 %v1392, %v1707
    %v1709 = vpop.f32.mrb[0].mxu0
    %v1710 = vadd.f32 %v1394, %v1709
    %1711 = vdwg.mxu0
    %1712 = vmatprep.subr.mxu0 %v1161
    %1713 = vmatpush1.msra.mxu0 %v1159
    %1714 = vmatprep.subr.mxu0 0.0
    %1715 = vmatpush1.msra.mxu0 0.0
    %1716 = vmatprep.subr.mxu0 0.0
    %1717 = vmatpush1.msra.mxu0 0.0
    %1718 = vmatprep.subr.mxu0 0.0
    %1719 = vmatpush1.msra.mxu0 0.0
    %1720 = vmatprep.subr.mxu0 0.0
    %1721 = vmatpush1.msra.mxu0 0.0
    %1722 = vmatprep.subr.mxu0 0.0
    %1723 = vmatpush1.msra.mxu0 0.0
    %1724 = vmatprep.subr.mxu0 0.0
    %1725 = vmatpush1.msra.mxu0 0.0
    %1726 = vmatprep.subr.mxu0 0.0
    %1727 = vmatpush1.msra.mxu0 0.0
    %1728 = vmatprep.subr.mxu0 0.0
    %1729 = vmatpush1.msra.mxu0 0.0
    %1730 = vmatprep.subr.mxu0 0.0
    %1731 = vmatpush1.msra.mxu0 0.0
    %1732 = vmatprep.subr.mxu0 0.0
    %1733 = vmatpush1.msra.mxu0 0.0
    %1734 = vmatprep.subr.mxu0 0.0
    %1735 = vmatpush1.msra.mxu0 0.0
    %1736 = vmatprep.subr.mxu0 0.0
    %1737 = vmatpush1.msra.mxu0 0.0
    %1738 = vmatprep.subr.mxu0 0.0
    %1739 = vmatpush1.msra.mxu0 0.0
    %1740 = vmatprep.subr.mxu0 0.0
    %1741 = vmatpush1.msra.mxu0 0.0
    %1742 = vmatprep.subr.mxu0 0.0
    %1743 = vmatpush1.msra.mxu0 0.0
    %1744 = vmatprep.subr.mxu0 0.0
    %1745 = vmatpush1.msra.mxu0 0.0
    %1746 = vmatprep.subr.mxu0 0.0
    %1747 = vmatpush1.msra.mxu0 0.0
    %1748 = vmatprep.subr.mxu0 0.0
    %1749 = vmatpush1.msra.mxu0 0.0
    %1750 = vmatprep.subr.mxu0 0.0
    %1751 = vmatpush1.msra.mxu0 0.0
    %1752 = vmatprep.subr.mxu0 0.0
    %1753 = vmatpush1.msra.mxu0 0.0
    %1754 = vmatprep.subr.mxu0 0.0
    %1755 = vmatpush1.msra.mxu0 0.0
    %1756 = vmatprep.subr.mxu0 0.0
    %1757 = vmatpush1.msra.mxu0 0.0
    %1758 = vmatprep.subr.mxu0 0.0
    %1759 = vmatpush1.msra.mxu0 0.0
    %1760 = vmatprep.subr.mxu0 0.0
    %1761 = vmatpush1.msra.mxu0 0.0
    %1762 = vmatprep.subr.mxu0 0.0
    %1763 = vmatpush1.msra.mxu0 0.0
    %1764 = vmatprep.subr.mxu0 0.0
    %1765 = vmatpush1.msra.mxu0 0.0
    %1766 = vmatprep.subr.mxu0 0.0
    %1767 = vmatpush1.msra.mxu0 0.0
    %1768 = vmatprep.subr.mxu0 0.0
    %1769 = vmatpush1.msra.mxu0 0.0
    %1770 = vmatprep.subr.mxu0 0.0
    %1771 = vmatpush1.msra.mxu0 0.0
    %1772 = vmatprep.subr.mxu0 0.0
    %1773 = vmatpush1.msra.mxu0 0.0
    %1774 = vmatprep.subr.mxu0 0.0
    %1775 = vmatpush1.msra.mxu0 0.0
    %1776 = vmatprep.mubr.f32.mxu0 0.0
    %1777 = vmatmul.mubr.f32.gmra.mrb[0].mxu0 %v1474
    %v1778 = vpop.f32.mrb[0].mxu0
    %v1779 = vadd.f32 %v1463, %v1778
    %v1780 = vpop.f32.mrb[0].mxu0
    %v1781 = vadd.f32 %v1465, %v1780
    %1782 = vmatprep.mubr.f32.mxu0 0.0
    %1783 = vmatmul.mubr.f32.gmra.mrb[0].mxu0 %v1477
    %v1784 = vpop.f32.mrb[0].mxu0
    %v1785 = vadd.f32 %v1469, %v1784
    %v1786 = vpop.f32.mrb[0].mxu0
    %v1787 = vadd.f32 %v1471, %v1786
    %1788 = vdwg.mxu0
    %v1789 = vld [vmem:[%s698] sm:$0xff]
    %v1790 = vld [vmem:[%s698 + $0x8] sm:$0xff]
    %v1791 = vcombine.high %v1129, %v1129
    %v1793 = vsel %vm50, %v1789, 0
    %v1796 = vsel %vm50, %v1790, 0
    %v1798 = vsel %vm57, %v1791, 0
    %1800 = vmatprep.subr.mxu0 %v1153
    %1801 = vmatpush1.msra.mxu0 %v1151
    %1802 = vmatprep.subr.mxu0 0.0
    %1803 = vmatpush1.msra.mxu0 0.0
    %1804 = vmatprep.subr.mxu0 0.0
    %1805 = vmatpush1.msra.mxu0 0.0
    %1806 = vmatprep.subr.mxu0 0.0
    %1807 = vmatpush1.msra.mxu0 0.0
    %1808 = vmatprep.subr.mxu0 0.0
    %1809 = vmatpush1.msra.mxu0 0.0
    %1810 = vmatprep.subr.mxu0 0.0
    %1811 = vmatpush1.msra.mxu0 0.0
    %1812 = vmatprep.subr.mxu0 0.0
    %1813 = vmatpush1.msra.mxu0 0.0
    %1814 = vmatprep.subr.mxu0 0.0
    %1815 = vmatpush1.msra.mxu0 0.0
    %1816 = vmatprep.subr.mxu0 0.0
    %1817 = vmatpush1.msra.mxu0 0.0
    %1818 = vmatprep.subr.mxu0 0.0
    %1819 = vmatpush1.msra.mxu0 0.0
    %1820 = vmatprep.subr.mxu0 0.0
    %1821 = vmatpush1.msra.mxu0 0.0
    %1822 = vmatprep.subr.mxu0 0.0
    %1823 = vmatpush1.msra.mxu0 0.0
    %1824 = vmatprep.subr.mxu0 0.0
    %1825 = vmatpush1.msra.mxu0 0.0
    %1826 = vmatprep.subr.mxu0 0.0
    %1827 = vmatpush1.msra.mxu0 0.0
    %1828 = vmatprep.subr.mxu0 0.0
    %1829 = vmatpush1.msra.mxu0 0.0
    %1830 = vmatprep.subr.mxu0 0.0
    %1831 = vmatpush1.msra.mxu0 0.0
    %1832 = vmatprep.subr.mxu0 0.0
    %1833 = vmatpush1.msra.mxu0 0.0
    %1834 = vmatprep.subr.mxu0 0.0
    %1835 = vmatpush1.msra.mxu0 0.0
    %1836 = vmatprep.subr.mxu0 0.0
    %1837 = vmatpush1.msra.mxu0 0.0
    %1838 = vmatprep.subr.mxu0 0.0
    %1839 = vmatpush1.msra.mxu0 0.0
    %1840 = vmatprep.subr.mxu0 0.0
    %1841 = vmatpush1.msra.mxu0 0.0
    %1842 = vmatprep.subr.mxu0 0.0
    %1843 = vmatpush1.msra.mxu0 0.0
    %1844 = vmatprep.subr.mxu0 0.0
    %1845 = vmatpush1.msra.mxu0 0.0
    %1846 = vmatprep.subr.mxu0 0.0
    %1847 = vmatpush1.msra.mxu0 0.0
    %1848 = vmatprep.subr.mxu0 0.0
    %1849 = vmatpush1.msra.mxu0 0.0
    %1850 = vmatprep.subr.mxu0 0.0
    %1851 = vmatpush1.msra.mxu0 0.0
    %1852 = vmatprep.subr.mxu0 0.0
    %1853 = vmatpush1.msra.mxu0 0.0
    %1854 = vmatprep.subr.mxu0 0.0
    %1855 = vmatpush1.msra.mxu0 0.0
    %1856 = vmatprep.subr.mxu0 0.0
    %1857 = vmatpush1.msra.mxu0 0.0
    %1858 = vmatprep.subr.mxu0 0.0
    %1859 = vmatpush1.msra.mxu0 0.0
    %1860 = vmatprep.subr.mxu0 0.0
    %1861 = vmatpush1.msra.mxu0 0.0
    %1862 = vmatprep.subr.mxu0 0.0
    %1863 = vmatpush1.msra.mxu0 0.0
    %1864 = vmatprep.mubr.f32.mxu0 0.0
    %1865 = vmatmul.mubr.f32.gmra.mrb[0].mxu0 %v1793
    %v1866 = vpop.f32.mrb[0].mxu0
    %v1867 = vadd.f32 0.0, %v1866
    %v1868 = vpop.f32.mrb[0].mxu0
    %v1869 = vadd.f32 0.0, %v1868
    %1870 = vmatprep.mubr.f32.mxu0 0.0
    %1871 = vmatmul.mubr.f32.gmra.mrb[0].mxu0 %v1796
    %v1872 = vpop.f32.mrb[0].mxu0
    %v1873 = vadd.f32 0.0, %v1872
    %v1874 = vpop.f32.mrb[0].mxu0
    %v1875 = vadd.f32 0.0, %v1874
    %1876 = vdwg.mxu0
    %1877 = vmatprep.subr.mxu0 %v1157
    %1878 = vmatpush1.msra.mxu0 %v1155
    %1879 = vmatprep.subr.mxu0 0.0
    %1880 = vmatpush1.msra.mxu0 0.0
    %1881 = vmatprep.subr.mxu0 0.0
    %1882 = vmatpush1.msra.mxu0 0.0
    %1883 = vmatprep.subr.mxu0 0.0
    %1884 = vmatpush1.msra.mxu0 0.0
    %1885 = vmatprep.subr.mxu0 0.0
    %1886 = vmatpush1.msra.mxu0 0.0
    %1887 = vmatprep.subr.mxu0 0.0
    %1888 = vmatpush1.msra.mxu0 0.0
    %1889 = vmatprep.subr.mxu0 0.0
    %1890 = vmatpush1.msra.mxu0 0.0
    %1891 = vmatprep.subr.mxu0 0.0
    %1892 = vmatpush1.msra.mxu0 0.0
    %1893 = vmatprep.subr.mxu0 0.0
    %1894 = vmatpush1.msra.mxu0 0.0
    %1895 = vmatprep.subr.mxu0 0.0
    %1896 = vmatpush1.msra.mxu0 0.0
    %1897 = vmatprep.subr.mxu0 0.0
    %1898 = vmatpush1.msra.mxu0 0.0
    %1899 = vmatprep.subr.mxu0 0.0
    %1900 = vmatpush1.msra.mxu0 0.0
    %1901 = vmatprep.subr.mxu0 0.0
    %1902 = vmatpush1.msra.mxu0 0.0
    %1903 = vmatprep.subr.mxu0 0.0
    %1904 = vmatpush1.msra.mxu0 0.0
    %1905 = vmatprep.subr.mxu0 0.0
    %1906 = vmatpush1.msra.mxu0 0.0
    %1907 = vmatprep.subr.mxu0 0.0
    %1908 = vmatpush1.msra.mxu0 0.0
    %1909 = vmatprep.subr.mxu0 0.0
    %1910 = vmatpush1.msra.mxu0 0.0
    %1911 = vmatprep.subr.mxu0 0.0
    %1912 = vmatpush1.msra.mxu0 0.0
    %1913 = vmatprep.subr.mxu0 0.0
    %1914 = vmatpush1.msra.mxu0 0.0
    %1915 = vmatprep.subr.mxu0 0.0
    %1916 = vmatpush1.msra.mxu0 0.0
    %1917 = vmatprep.subr.mxu0 0.0
    %1918 = vmatpush1.msra.mxu0 0.0
    %1919 = vmatprep.subr.mxu0 0.0
    %1920 = vmatpush1.msra.mxu0 0.0
    %1921 = vmatprep.subr.mxu0 0.0
    %1922 = vmatpush1.msra.mxu0 0.0
    %1923 = vmatprep.subr.mxu0 0.0
    %1924 = vmatpush1.msra.mxu0 0.0
    %1925 = vmatprep.subr.mxu0 0.0
    %1926 = vmatpush1.msra.mxu0 0.0
    %1927 = vmatprep.subr.mxu0 0.0
    %1928 = vmatpush1.msra.mxu0 0.0
    %1929 = vmatprep.subr.mxu0 0.0
    %1930 = vmatpush1.msra.mxu0 0.0
    %1931 = vmatprep.subr.mxu0 0.0
    %1932 = vmatpush1.msra.mxu0 0.0
    %1933 = vmatprep.subr.mxu0 0.0
    %1934 = vmatpush1.msra.mxu0 0.0
    %1935 = vmatprep.subr.mxu0 0.0
    %1936 = vmatpush1.msra.mxu0 0.0
    %1937 = vmatprep.subr.mxu0 0.0
    %1938 = vmatpush1.msra.mxu0 0.0
    %1939 = vmatprep.subr.mxu0 0.0
    %1940 = vmatpush1.msra.mxu0 0.0
    %1941 = vmatprep.mubr.f32.mxu0 0.0
    %1942 = vmatmul.mubr.f32.gmra.mrb[0].mxu0 %v1793
    %v1943 = vpop.f32.mrb[0].mxu0
    %v1944 = vadd.f32 0.0, %v1943
    %v1945 = vpop.f32.mrb[0].mxu0
    %v1946 = vadd.f32 0.0, %v1945
    %1947 = vmatprep.mubr.f32.mxu0 0.0
    %1948 = vmatmul.mubr.f32.gmra.mrb[0].mxu0 %v1796
    %v1949 = vpop.f32.mrb[0].mxu0
    %v1950 = vadd.f32 0.0, %v1949
    %v1951 = vpop.f32.mrb[0].mxu0
    %v1952 = vadd.f32 0.0, %v1951
    %1953 = vdwg.mxu0
    %1954 = vmatprep.subr.mxu0 %v1161
    %1955 = vmatpush1.msra.mxu0 %v1159
    %1956 = vmatprep.subr.mxu0 0.0
    %1957 = vmatpush1.msra.mxu0 0.0
    %1958 = vmatprep.subr.mxu0 0.0
    %1959 = vmatpush1.msra.mxu0 0.0
    %1960 = vmatprep.subr.mxu0 0.0
    %1961 = vmatpush1.msra.mxu0 0.0
    %1962 = vmatprep.subr.mxu0 0.0
    %1963 = vmatpush1.msra.mxu0 0.0
    %1964 = vmatprep.subr.mxu0 0.0
    %1965 = vmatpush1.msra.mxu0 0.0
    %1966 = vmatprep.subr.mxu0 0.0
    %1967 = vmatpush1.msra.mxu0 0.0
    %1968 = vmatprep.subr.mxu0 0.0
    %1969 = vmatpush1.msra.mxu0 0.0
    %1970 = vmatprep.subr.mxu0 0.0
    %1971 = vmatpush1.msra.mxu0 0.0
    %1972 = vmatprep.subr.mxu0 0.0
    %1973 = vmatpush1.msra.mxu0 0.0
    %1974 = vmatprep.subr.mxu0 0.0
    %1975 = vmatpush1.msra.mxu0 0.0
    %1976 = vmatprep.subr.mxu0 0.0
    %1977 = vmatpush1.msra.mxu0 0.0
    %1978 = vmatprep.subr.mxu0 0.0
    %1979 = vmatpush1.msra.mxu0 0.0
    %1980 = vmatprep.subr.mxu0 0.0
    %1981 = vmatpush1.msra.mxu0 0.0
    %1982 = vmatprep.subr.mxu0 0.0
    %1983 = vmatpush1.msra.mxu0 0.0
    %1984 = vmatprep.subr.mxu0 0.0
    %1985 = vmatpush1.msra.mxu0 0.0
    %1986 = vmatprep.subr.mxu0 0.0
    %1987 = vmatpush1.msra.mxu0 0.0
    %1988 = vmatprep.subr.mxu0 0.0
    %1989 = vmatpush1.msra.mxu0 0.0
    %1990 = vmatprep.subr.mxu0 0.0
    %1991 = vmatpush1.msra.mxu0 0.0
    %1992 = vmatprep.subr.mxu0 0.0
    %1993 = vmatpush1.msra.mxu0 0.0
    %1994 = vmatprep.subr.mxu0 0.0
    %1995 = vmatpush1.msra.mxu0 0.0
    %1996 = vmatprep.subr.mxu0 0.0
    %1997 = vmatpush1.msra.mxu0 0.0
    %1998 = vmatprep.subr.mxu0 0.0
    %1999 = vmatpush1.msra.mxu0 0.0
    %2000 = vmatprep.subr.mxu0 0.0
    %2001 = vmatpush1.msra.mxu0 0.0
    %2002 = vmatprep.subr.mxu0 0.0
    %2003 = vmatpush1.msra.mxu0 0.0
    %2004 = vmatprep.subr.mxu0 0.0
    %2005 = vmatpush1.msra.mxu0 0.0
    %2006 = vmatprep.subr.mxu0 0.0
    %2007 = vmatpush1.msra.mxu0 0.0
    %2008 = vmatprep.subr.mxu0 0.0
    %2009 = vmatpush1.msra.mxu0 0.0
    %2010 = vmatprep.subr.mxu0 0.0
    %2011 = vmatpush1.msra.mxu0 0.0
    %2012 = vmatprep.subr.mxu0 0.0
    %2013 = vmatpush1.msra.mxu0 0.0
    %2014 = vmatprep.subr.mxu0 0.0
    %2015 = vmatpush1.msra.mxu0 0.0
    %2016 = vmatprep.subr.mxu0 0.0
    %2017 = vmatpush1.msra.mxu0 0.0
    %2018 = vmatprep.mubr.f32.mxu0 0.0
    %2019 = vmatmul.mubr.f32.gmra.mrb[0].mxu0 %v1793
    %v2020 = vpop.f32.mrb[0].mxu0
    %v2021 = vadd.f32 0.0, %v2020
    %v2022 = vpop.f32.mrb[0].mxu0
    %v2023 = vadd.f32 0.0, %v2022
    %2024 = vmatprep.mubr.f32.mxu0 0.0
    %2025 = vmatmul.mubr.f32.gmra.mrb[0].mxu0 %v1796
    %v2026 = vpop.f32.mrb[0].mxu0
    %v2027 = vadd.f32 0.0, %v2026
    %v2028 = vpop.f32.mrb[0].mxu0
    %v2029 = vadd.f32 0.0, %v2028
    %2030 = vdwg.mxu0
    %2031 = vmatprep.subr.mxu0 %v1798
    %2032 = vmatpush1.msra.mxu0 %v1163
    %2033 = vmatprep.subr.mxu0 0.0
    %2034 = vmatpush1.msra.mxu0 0.0
    %2035 = vmatprep.subr.mxu0 0.0
    %2036 = vmatpush1.msra.mxu0 0.0
    %2037 = vmatprep.subr.mxu0 0.0
    %2038 = vmatpush1.msra.mxu0 0.0
    %2039 = vmatprep.subr.mxu0 0.0
    %2040 = vmatpush1.msra.mxu0 0.0
    %2041 = vmatprep.subr.mxu0 0.0
    %2042 = vmatpush1.msra.mxu0 0.0
    %2043 = vmatprep.subr.mxu0 0.0
    %2044 = vmatpush1.msra.mxu0 0.0
    %2045 = vmatprep.subr.mxu0 0.0
    %2046 = vmatpush1.msra.mxu0 0.0
    %2047 = vmatprep.subr.mxu0 0.0
    %2048 = vmatpush1.msra.mxu0 0.0
    %2049 = vmatprep.subr.mxu0 0.0
    %2050 = vmatpush1.msra.mxu0 0.0
    %2051 = vmatprep.subr.mxu0 0.0
    %2052 = vmatpush1.msra.mxu0 0.0
    %2053 = vmatprep.subr.mxu0 0.0
    %2054 = vmatpush1.msra.mxu0 0.0
    %2055 = vmatprep.subr.mxu0 0.0
    %2056 = vmatpush1.msra.mxu0 0.0
    %2057 = vmatprep.subr.mxu0 0.0
    %2058 = vmatpush1.msra.mxu0 0.0
    %2059 = vmatprep.subr.mxu0 0.0
    %2060 = vmatpush1.msra.mxu0 0.0
    %2061 = vmatprep.subr.mxu0 0.0
    %2062 = vmatpush1.msra.mxu0 0.0
    %2063 = vmatprep.subr.mxu0 0.0
    %2064 = vmatpush1.msra.mxu0 0.0
    %2065 = vmatprep.subr.mxu0 0.0
    %2066 = vmatpush1.msra.mxu0 0.0
    %2067 = vmatprep.subr.mxu0 0.0
    %2068 = vmatpush1.msra.mxu0 0.0
    %2069 = vmatprep.subr.mxu0 0.0
    %2070 = vmatpush1.msra.mxu0 0.0
    %2071 = vmatprep.subr.mxu0 0.0
    %2072 = vmatpush1.msra.mxu0 0.0
    %2073 = vmatprep.subr.mxu0 0.0
    %2074 = vmatpush1.msra.mxu0 0.0
    %2075 = vmatprep.subr.mxu0 0.0
    %2076 = vmatpush1.msra.mxu0 0.0
    %2077 = vmatprep.subr.mxu0 0.0
    %2078 = vmatpush1.msra.mxu0 0.0
    %2079 = vmatprep.subr.mxu0 0.0
    %2080 = vmatpush1.msra.mxu0 0.0
    %2081 = vmatprep.subr.mxu0 0.0
    %2082 = vmatpush1.msra.mxu0 0.0
    %2083 = vmatprep.subr.mxu0 0.0
    %2084 = vmatpush1.msra.mxu0 0.0
    %2085 = vmatprep.subr.mxu0 0.0
    %2086 = vmatpush1.msra.mxu0 0.0
    %2087 = vmatprep.subr.mxu0 0.0
    %2088 = vmatpush1.msra.mxu0 0.0
    %2089 = vmatprep.subr.mxu0 0.0
    %2090 = vmatpush1.msra.mxu0 0.0
    %2091 = vmatprep.subr.mxu0 0.0
    %2092 = vmatpush1.msra.mxu0 0.0
    %2093 = vmatprep.subr.mxu0 0.0
    %2094 = vmatpush1.msra.mxu0 0.0
    %2095 = vmatprep.mubr.f32.mxu0 0.0
    %2096 = vmatmul.mubr.f32.gmra.mrb[0].mxu0 %v1793
    %v2097 = vpop.f32.mrb[0].mxu0
    %v2098 = vadd.f32 0.0, %v2097
    %v2099 = vpop.f32.mrb[0].mxu0
    %v2100 = vadd.f32 0.0, %v2099
    %2101 = vmatprep.mubr.f32.mxu0 0.0
    %2102 = vmatmul.mubr.f32.gmra.mrb[0].mxu0 %v1796
    %v2103 = vpop.f32.mrb[0].mxu0
    %v2104 = vadd.f32 0.0, %v2103
    %v2105 = vpop.f32.mrb[0].mxu0
    %v2106 = vadd.f32 0.0, %v2105
    %2107 = vdwg.mxu0
    %v2108 = vadd.f32 %v1548, %v1867
    %v2109 = vadd.f32 %v1550, %v1869
    %v2110 = vadd.f32 %v1625, %v1944
    %v2111 = vadd.f32 %v1627, %v1946
    %v2112 = vadd.f32 %v1702, %v2021
    %v2113 = vadd.f32 %v1704, %v2023
    %v2114 = vadd.f32 %v1779, %v2098
    %v2115 = vadd.f32 %v1781, %v2100
    %v2116 = vadd.f32 %v1554, %v1873
    %v2117 = vadd.f32 %v1556, %v1875
    %v2118 = vadd.f32 %v1631, %v1950
    %v2119 = vadd.f32 %v1633, %v1952
    %v2120 = vadd.f32 %v1708, %v2027
    %v2121 = vadd.f32 %v1710, %v2029
    %v2122 = vadd.f32 %v1785, %v2104
    %v2123 = vadd.f32 %v1787, %v2106
    %v2124 = vadd.f32 %v2108, %v1037
    %v2125 = vadd.f32 %v2109, %v1037
    %v2126 = vadd.f32 %v2110, %v1037
    %v2127 = vadd.f32 %v2111, %v1037
    %v2128 = vadd.f32 %v2112, %v1037
    %v2129 = vadd.f32 %v2113, %v1037
    %v2130 = vadd.f32 %v2114, %v1037
    %v2131 = vadd.f32 %v2115, %v1037
    %v2132 = vadd.f32 %v2116, %v1042
    %v2133 = vadd.f32 %v2117, %v1042
    %v2134 = vadd.f32 %v2118, %v1042
    %v2135 = vadd.f32 %v2119, %v1042
    %v2136 = vadd.f32 %v2120, %v1042
    %v2137 = vadd.f32 %v2121, %v1042
    %v2138 = vadd.f32 %v2122, %v1042
    %v2139 = vadd.f32 %v2123, %v1042
    %v2140 = vxor.u32 %v2132, 2147483648
    %v2141 = vxor.u32 %v2133, 2147483648
    %v2142 = vxor.u32 %v2134, 2147483648
    %v2143 = vxor.u32 %v2135, 2147483648
    %v2144 = vxor.u32 %v2136, 2147483648
    %v2145 = vxor.u32 %v2137, 2147483648
    %v2146 = vxor.u32 %v2138, 2147483648
    %v2147 = vxor.u32 %v2139, 2147483648
    %v2148 = vmul.f32 %v2140, 1.442695
    %v2149 = vpow.pop %v2148
    %v2150 = vmul.f32 %v2141, 1.442695
    %v2151 = vpow.pop %v2150
    %v2152 = vmul.f32 %v2142, 1.442695
    %v2153 = vpow.pop %v2152
    %v2154 = vmul.f32 %v2143, 1.442695
    %v2155 = vpow.pop %v2154
    %v2156 = vmul.f32 %v2144, 1.442695
    %v2157 = vpow.pop %v2156
    %v2158 = vmul.f32 %v2145, 1.442695
    %v2159 = vpow.pop %v2158
    %v2160 = vmul.f32 %v2146, 1.442695
    %v2161 = vpow.pop %v2160
    %v2162 = vmul.f32 %v2147, 1.442695
    %v2163 = vpow.pop %v2162
    %v2164 = vadd.f32 %v2149, 1.0
    %v2165 = vadd.f32 %v2151, 1.0
    %v2166 = vadd.f32 %v2153, 1.0
    %v2167 = vadd.f32 %v2155, 1.0
    %v2168 = vadd.f32 %v2157, 1.0
    %v2169 = vadd.f32 %v2159, 1.0
    %v2170 = vadd.f32 %v2161, 1.0
    %v2171 = vadd.f32 %v2163, 1.0
    %v2172 = vrcp.pop %v2164
    %v2173 = vmul.f32 1.0, %v2172
    %v2174 = vrcp.pop %v2165
    %v2175 = vmul.f32 1.0, %v2174
    %v2176 = vrcp.pop %v2166
    %v2177 = vmul.f32 1.0, %v2176
    %v2178 = vrcp.pop %v2167
    %v2179 = vmul.f32 1.0, %v2178
    %v2180 = vrcp.pop %v2168
    %v2181 = vmul.f32 1.0, %v2180
    %v2182 = vrcp.pop %v2169
    %v2183 = vmul.f32 1.0, %v2182
    %v2184 = vrcp.pop %v2170
    %v2185 = vmul.f32 1.0, %v2184
    %v2186 = vrcp.pop %v2171
    %v2187 = vmul.f32 1.0, %v2186
    %v2188 = vmul.f32 %v2124, %v2173
    %v2189 = vmul.f32 %v2125, %v2175
    %v2190 = vmul.f32 %v2126, %v2177
    %v2191 = vmul.f32 %v2127, %v2179
    %v2192 = vmul.f32 %v2128, %v2181
    %v2193 = vmul.f32 %v2129, %v2183
    %v2194 = vmul.f32 %v2130, %v2185
    %v2195 = vmul.f32 %v2131, %v2187
    %s2196 = scalar_lea.vmem [#allocation5], 64
    %2197 = vst [vmem:[%s2196] sm:$0xff] %v2188
    %2198 = vst [vmem:[%s2196 + $0x8] sm:$0xff] %v2189
    %2199 = vst [vmem:[%s2196 + $0x10] sm:$0xff] %v2190
    %2200 = vst [vmem:[%s2196 + $0x18] sm:$0xff] %v2191
    %2201 = vst [vmem:[%s2196 + $0x20] sm:$0xff] %v2192
    %2202 = vst [vmem:[%s2196 + $0x28] sm:$0xff] %v2193
    %2203 = vst [vmem:[%s2196 + $0x30] sm:$0xff] %v2194
    %2204 = vst [vmem:[%s2196 + $0x38] sm:$0xff] %v2195
    // Predicated region
    $region18: #{tpu_custom_call.1} parent=1 // pred_check
      _
    $region19: #{tpu_custom_call.1} parent=1 // pred_check_branch
      %2206 = sbr.rel (0) target = $region21
    $region20: #{tpu_custom_call.1} parent=1 // pred_region
      %s2208 = ssub.s32 2048, 2048
      %2209 = vsyncadd [#allocation4], %s2208
      %s2210 = sshll.u32 [#allocation5], 4
      %s2211 = int_to_ptr.vmem [resolvable:$true] %s2210
      %2216 = dma.vmem_to_hbm [thread:$0]  %s2211, 2048, %s3, [#allocation4], 1024, 1024, 64
    $region21: #{tpu_custom_call.1} parent=1 // pred_fallthru
      _
    // Predicated region
    $region22: #{tpu_custom_call.1} parent=1 // pred_check
      _
    $region23: #{tpu_custom_call.1} parent=1 // pred_check_branch
      %2218 = sbr.rel (0) target = $region25
    $region24: #{tpu_custom_call.1} parent=1 // pred_region
      %2219 = dma.done [#allocation4], 2048
    $region25: #{tpu_custom_call.1} parent=1 // pred_fallthru
      _
    %2220 = vsyncpa [#allocation3], 1
    %2221 = vsyncpa [#allocation4], 1

</llo_original>
